<compile_context>
chip_gen: v5e
topology: v5e:2x2
jax: 0.10.0
libtpu: 0.0.40
codegen_flags: <defaults>
</compile_context>

<pallas_src>
import functools

import jax
import jax.numpy as jnp
from jax.experimental import pallas as pl
from jax.experimental.pallas import tpu as pltpu

LN_EPS = 1e-5  # torch nn.LayerNorm default


def _round_up(x, m):
    return ((x + m - 1) // m) * m


def _choose_fk(F, fk_max):
    """Largest multiple-of-128 divisor of F that is <= fk_max (falls back to F)."""
    best = None
    c = 128
    limit = min(F, fk_max)
    while c <= limit:
        if F % c == 0:
            best = c
        c += 128
    return best if best is not None else F


def _device_defaults():
    """Per-chip knobs: VMEM capacity, default row-tile size, TensorCores per chip."""
    kind = ""
    try:
        kind = jax.devices()[0].device_kind.lower()
    except Exception:
        pass
    try:
        vmem_cap = int(pltpu.get_tpu_info().vmem_capacity_bytes)
    except Exception:
        vmem_cap = 64 << 20  # conservative fallback: v7x has 64 MiB per TensorCore
    is_v5e = ("v5 lite" in kind) or ("v5e" in kind) or ("v5lite" in kind)
    num_cores = 2 if "v7" in kind else 1
    # v5e MXU is 128-wide, so 256-row LHS tiles buy nothing; v6e/v7x like bigger tiles.
    tm_max = 256 if is_v5e else 512
    return vmem_cap, tm_max, num_cores


# ---------------------------------------------------------------------------
# Path A: resident weights (full bf16 W1/W2 live in VMEM, F chunked in-kernel).
# ---------------------------------------------------------------------------
def ffn_resident_kernel(x_ref, w1_ref, b1_ref, w2_ref, b2_ref, g_ref, beta_ref,
                        o_ref, *, fk, n_fk):
    """One (tm, D) row tile of LayerNorm(x + W2(relu(W1 x)))."""
    x_f32 = x_ref[...]                       # f32 for residual / LayerNorm
    x_bf16 = x_f32.astype(jnp.bfloat16)      # bf16 for the MXU

    y = jnp.zeros(o_ref.shape, jnp.float32)
    # Static, fully-unrolled chunk loop over the hidden (F) dim keeps the live
    # (tm, fk) intermediate bounded (avoids vreg -> VMEM spills).
    for c in range(n_fk):
        lo = c * fk
        h = jnp.dot(x_bf16, w1_ref[:, lo:lo + fk],
                    preferred_element_type=jnp.float32) + b1_ref[:, lo:lo + fk]
        h = jnp.maximum(h, 0.0)
        y = y + jnp.dot(h.astype(jnp.bfloat16), w2_ref[lo:lo + fk, :],
                        preferred_element_type=jnp.float32)

    # TODO(synk): dropout omitted — identity in eval mode (no RNG state in forward spec).
    # residual (original f32 x) with b2 folded in, then LayerNorm over model_dim.
    z = x_f32 + y + b2_ref[...]
    mean = jnp.mean(z, axis=-1, keepdims=True)
    var = jnp.mean((z - mean) * (z - mean), axis=-1, keepdims=True)
    zn = (z - mean) * jax.lax.rsqrt(var + LN_EPS)
    o_ref[...] = (zn * g_ref[...] + beta_ref[...]).astype(o_ref.dtype)


# ---------------------------------------------------------------------------
# Path B: streamed weights. W1/W2 chunks are DMA'd per step along a trailing
# "arbitrary" F-axis; y accumulates in a (tm, D) f32 VMEM scratch. Used when
# D*F is too large for resident weights (e.g. v7x's 64 MiB VMEM per core).
# ---------------------------------------------------------------------------
def ffn_stream_kernel(x_ref, w1_ref, b1_ref, w2_ref, b2_ref, g_ref, beta_ref,
                      o_ref, acc_ref):
    k = pl.program_id(1)

    @pl.when(k == 0)
    def _():
        acc_ref[...] = jnp.zeros_like(acc_ref)

    x_bf16 = x_ref[...].astype(jnp.bfloat16)
    h = jnp.dot(x_bf16, w1_ref[...], preferred_element_type=jnp.float32) + b1_ref[...]
    h = jnp.maximum(h, 0.0)
    acc_ref[...] += jnp.dot(h.astype(jnp.bfloat16), w2_ref[...],
                            preferred_element_type=jnp.float32)

    @pl.when(k == pl.num_programs(1) - 1)
    def _():
        z = x_ref[...] + acc_ref[...] + b2_ref[...]
        mean = jnp.mean(z, axis=-1, keepdims=True)
        var = jnp.mean((z - mean) * (z - mean), axis=-1, keepdims=True)
        zn = (z - mean) * jax.lax.rsqrt(var + LN_EPS)
        o_ref[...] = (zn * g_ref[...] + beta_ref[...]).astype(o_ref.dtype)


@functools.partial(jax.jit,
                   static_argnames=("tm", "fk", "use_stream", "vmem_bytes"))
def _ffn_impl(x2d, w1, b1, w2, b2, gamma, beta, *, tm, fk, use_stream, vmem_bytes):
    M, D = x2d.shape
    F = w1.shape[1]
    M_pad = _round_up(M, tm)
    if M_pad != M:
        x2d = jnp.pad(x2d, ((0, M_pad - M), (0, 0)))

    cost = pl.CostEstimate(
        flops=4 * M_pad * D * F,                 # two matmuls
        transcendentals=M_pad,                   # one rsqrt per row (LayerNorm)
        bytes_accessed=2 * 4 * M_pad * D + 2 * 2 * D * F + 4 * (F + 3 * D),
    )

    if not use_stream:
        grid = (M_pad // tm,)
        out2d = pl.pallas_call(
            functools.partial(ffn_resident_kernel, fk=fk, n_fk=F // fk),
            out_shape=jax.ShapeDtypeStruct((M_pad, D), x2d.dtype),
            grid_spec=pltpu.PrefetchScalarGridSpec(
                num_scalar_prefetch=0,
                grid=grid,
                in_specs=[
                    pl.BlockSpec((tm, D), lambda i: (i, 0)),      # x tile (streamed)
                    pl.BlockSpec((D, F), lambda i: (0, 0),
                                 pipeline_mode=pl.Buffered(1)),   # w1 (resident, bf16)
                    pl.BlockSpec((1, F), lambda i: (0, 0),
                                 pipeline_mode=pl.Buffered(1)),   # b1
                    pl.BlockSpec((F, D), lambda i: (0, 0),
                                 pipeline_mode=pl.Buffered(1)),   # w2 (resident, bf16)
                    pl.BlockSpec((1, D), lambda i: (0, 0),
                                 pipeline_mode=pl.Buffered(1)),   # b2
                    pl.BlockSpec((1, D), lambda i: (0, 0),
                                 pipeline_mode=pl.Buffered(1)),   # gamma
                    pl.BlockSpec((1, D), lambda i: (0, 0),
                                 pipeline_mode=pl.Buffered(1)),   # beta
                ],
                out_specs=pl.BlockSpec((tm, D), lambda i: (i, 0)),
            ),
            compiler_params=pltpu.CompilerParams(
                dimension_semantics=("parallel",),
                vmem_limit_bytes=vmem_bytes,
            ),
            cost_estimate=cost,
        )(x2d, w1, b1, w2, b2, gamma, beta)
    else:
        grid = (M_pad // tm, F // fk)
        out2d = pl.pallas_call(
            ffn_stream_kernel,
            out_shape=jax.ShapeDtypeStruct((M_pad, D), x2d.dtype),
            grid_spec=pltpu.PrefetchScalarGridSpec(
                num_scalar_prefetch=0,
                grid=grid,
                in_specs=[
                    pl.BlockSpec((tm, D), lambda i, k: (i, 0)),   # x (constant over k)
                    pl.BlockSpec((D, fk), lambda i, k: (0, k)),   # w1 chunk (streamed)
                    pl.BlockSpec((1, fk), lambda i, k: (0, k)),   # b1 chunk
                    pl.BlockSpec((fk, D), lambda i, k: (k, 0)),   # w2 chunk (streamed)
                    pl.BlockSpec((1, D), lambda i, k: (0, 0),
                                 pipeline_mode=pl.Buffered(1)),   # b2
                    pl.BlockSpec((1, D), lambda i, k: (0, 0),
                                 pipeline_mode=pl.Buffered(1)),   # gamma
                    pl.BlockSpec((1, D), lambda i, k: (0, 0),
                                 pipeline_mode=pl.Buffered(1)),   # beta
                ],
                out_specs=pl.BlockSpec((tm, D), lambda i, k: (i, 0)),
                scratch_shapes=[pltpu.VMEM((tm, D), jnp.float32)],
            ),
            compiler_params=pltpu.CompilerParams(
                dimension_semantics=("parallel", "arbitrary"),
                vmem_limit_bytes=vmem_bytes,
            ),
            cost_estimate=cost,
        )(x2d, w1, b1, w2, b2, gamma, beta)

    return out2d[:M]


def prepare_params(w1, b1, w2, b2, gamma, beta):
    """One-time param prep: bf16 weights + (1, dim) f32 bias/LN rows.

    Hoisted out of the per-step call so weights are not re-cast (extra HBM
    traffic) on every invocation."""
    D, F = w1.shape
    return {
        "w1": jnp.asarray(w1, jnp.bfloat16),
        "b1": jnp.asarray(b1, jnp.float32).reshape(1, F),
        "w2": jnp.asarray(w2, jnp.bfloat16),
        "b2": jnp.asarray(b2, jnp.float32).reshape(1, D),
        "gamma": jnp.asarray(gamma, jnp.float32).reshape(1, D),
        "beta": jnp.asarray(beta, jnp.float32).reshape(1, D),
    }


def positional_wise_ffn(x, params, *, fk_max=1024, tm_max=None, force_stream=False):
    """x: (B, S, D) float32; params from prepare_params()."""
    B, S, D = x.shape
    F = params["w1"].shape[1]
    assert D % 128 == 0, "model_dim must be a multiple of the 128-lane width"
    M = B * S

    vmem_cap, tm_max_dev, num_cores = _device_defaults()
    if tm_max is None:
        tm_max = tm_max_dev
    budget_cap = max(32 << 20, int(vmem_cap * 0.8))

    # Hidden-dim chunk: largest multiple-of-128 divisor of F that is <= fk_max.
    fk = _choose_fk(F, fk_max)

    # Resident bf16 weights (single-buffered) if they leave >= half the VMEM
    # budget for activation tiles; otherwise stream (D, fk)/(fk, D) chunks.
    resident_weight_bytes = 2 * D * F * 2
    use_stream = force_stream or (resident_weight_bytes > budget_cap // 2)
    if use_stream and not (F % fk == 0 and fk % 128 == 0):
        use_stream = False  # no clean F split; fall back to resident (best effort)
    if use_stream:
        tm_max = max(tm_max, 512)  # keep weight-stream arithmetic intensity high

    # Row tile: minimize padding waste; on multi-TC chips keep >= num_cores grid
    # steps so both TensorCores get work (as long as tiles stay reasonably big).
    min_tiles = num_cores if M >= 128 * num_cores else 1
    n_tiles = max(pl.cdiv(M, tm_max), min_tiles)
    tm = max(8, _round_up(pl.cdiv(M, n_tiles), 8))

    # Explicit VMEM budget from what's actually live per path.
    param_bytes = 4 * (F + 3 * D)
    if use_stream:
        need = (2 * 2 * (D * fk * 2)          # w1/w2 chunks, bf16, double-buffered
                + 2 * (fk * 4)                # b1 chunk
                + 2 * 2 * (tm * D * 4)        # x + out tiles, f32, double-buffered
                + tm * D * 4                  # f32 accumulator scratch
                + 3 * (tm * fk * 4)           # live h chunk (+ bf16 copy, slack)
                + param_bytes)
    else:
        need = (resident_weight_bytes         # single-buffered resident weights
                + 2 * 2 * (tm * D * 4)        # x + out tiles, f32, double-buffered
                + 3 * (tm * fk * 4)           # live h chunk (+ bf16 copy, slack)
                + param_bytes)
    vmem_bytes = min(max(int(1.25 * need), 16 << 20), budget_cap)

    out2d = _ffn_impl(x.reshape(M, D),
                      params["w1"], params["b1"], params["w2"], params["b2"],
                      params["gamma"], params["beta"],
                      tm=tm, fk=fk, use_stream=use_stream, vmem_bytes=vmem_bytes)
    return out2d.reshape(B, S, D)


def reference(x, w1, b1, w2, b2, gamma, beta):
    h = jnp.maximum(x @ w1 + b1, 0.0)
    y = h @ w2 + b2
    z = x + y
    mean = jnp.mean(z, axis=-1, keepdims=True)
    var = jnp.var(z, axis=-1, keepdims=True)
    return (z - mean) / jnp.sqrt(var + LN_EPS) * gamma + beta


if __name__ == "__main__":
    # small shapes matching the module defaults (model_dim=256, ffn_dim=1024)
    B, S = 2, 8
    model_dim, ffn_dim = 256, 1024

    key = jax.random.PRNGKey(0)
    kx, kw1, kb1, kw2, kb2 = jax.random.split(key, 5)

    x = jax.random.normal(kx, (B, S, model_dim), dtype=jnp.float32)

    # deterministic param init (Kaiming-uniform-ish scale, like nn.Linear)
    lim1 = 1.0 / (model_dim ** 0.5)
    lim2 = 1.0 / (ffn_dim ** 0.5)
    w1 = jax.random.uniform(kw1, (model_dim, ffn_dim), jnp.float32, -lim1, lim1)
    b1 = jax.random.uniform(kb1, (ffn_dim,), jnp.float32, -lim1, lim1)
    w2 = jax.random.uniform(kw2, (ffn_dim, model_dim), jnp.float32, -lim2, lim2)
    b2 = jax.random.uniform(kb2, (model_dim,), jnp.float32, -lim2, lim2)
    gamma = jnp.ones((model_dim,), jnp.float32)   # nn.LayerNorm default init
    beta = jnp.zeros((model_dim,), jnp.float32)

    params = prepare_params(w1, b1, w2, b2, gamma, beta)  # one-time bf16 cast
    ref = reference(x, w1, b1, w2, b2, gamma, beta)

    # Path A: resident-weight kernel (the default at these shapes).
    out = jax.block_until_ready(positional_wise_ffn(x, params))
    assert out.shape == (B, S, model_dim)
    err = float(jnp.max(jnp.abs(out - ref)))
    # bf16 MXU inputs with f32 accumulation; f32 residual/LayerNorm epilogue
    assert err < 5e-2, f"resident path mismatch vs. reference: max abs err = {err}"

    # Path B: streamed-F fallback (forced here to validate the large-D*F path).
    out_s = jax.block_until_ready(
        positional_wise_ffn(x, params, force_stream=True, fk_max=256))
    err_s = float(jnp.max(jnp.abs(out_s - ref)))
    assert err_s < 5e-2, f"stream path mismatch vs. reference: max abs err = {err_s}"

    print("KERNEL_OK")
</pallas_src>

<mosaic_0001>
module attributes {stable_mosaic.version = 11 : i64} {
  func.func @ffn_resident_kernel(%arg0: i32, %arg1: memref<16x256xf32, #tpu.memory_space<vmem>>, %arg2: memref<256x1024xbf16, #tpu.memory_space<vmem>>, %arg3: memref<1x1024xf32, #tpu.memory_space<vmem>>, %arg4: memref<1024x256xbf16, #tpu.memory_space<vmem>>, %arg5: memref<1x256xf32, #tpu.memory_space<vmem>>, %arg6: memref<1x256xf32, #tpu.memory_space<vmem>>, %arg7: memref<1x256xf32, #tpu.memory_space<vmem>>, %arg8: memref<16x256xf32, #tpu.memory_space<vmem>>) attributes {dimension_semantics = [#tpu.dimension_semantics<parallel>], iteration_bounds = array<i64: 1>, scalar_prefetch = 0 : i64, scratch_operands = 0 : i64, tpu.core_type = #tpu.core_type<tc>, window_params = [{transform_indices = @transform_0, window_bounds = array<i64: 16, 256>}, {pipeline_mode = #tpu.pipeline_mode<synchronous>, transform_indices = @transform_1, window_bounds = array<i64: 256, 1024>}, {pipeline_mode = #tpu.pipeline_mode<synchronous>, transform_indices = @transform_2, window_bounds = array<i64: 1, 1024>}, {pipeline_mode = #tpu.pipeline_mode<synchronous>, transform_indices = @transform_3, window_bounds = array<i64: 1024, 256>}, {pipeline_mode = #tpu.pipeline_mode<synchronous>, transform_indices = @transform_4, window_bounds = array<i64: 1, 256>}, {pipeline_mode = #tpu.pipeline_mode<synchronous>, transform_indices = @transform_5, window_bounds = array<i64: 1, 256>}, {pipeline_mode = #tpu.pipeline_mode<synchronous>, transform_indices = @transform_6, window_bounds = array<i64: 1, 256>}, {transform_indices = @transform_7, window_bounds = array<i64: 16, 256>}]} {
    %c0 = arith.constant 0 : index
    %c0_0 = arith.constant 0 : index
    %0 = vector.load %arg1[%c0, %c0_0] : memref<16x256xf32, #tpu.memory_space<vmem>>, vector<16x256xf32>
    %1 = arith.truncf %0 : vector<16x256xf32> to vector<16x256xbf16>
    %cst = arith.constant 0.000000e+00 : f32
    %2 = vector.broadcast %cst : f32 to vector<16x256xf32>
    %c0_1 = arith.constant 0 : index
    %c0_2 = arith.constant 0 : index
    %3 = vector.load %arg2[%c0_1, %c0_2] : memref<256x1024xbf16, #tpu.memory_space<vmem>>, vector<256x1024xbf16>
    %cst_3 = arith.constant dense<0.000000e+00> : vector<16x1024xf32>
    %4 = tpu.matmul %1, %3, %cst_3 {dimension_numbers = #tpu.dot_dimension_numbers<[1], [0], [0], [1], [0, 0, 1, 1], [], []>} : vector<16x256xbf16>, vector<256x1024xbf16>, vector<16x1024xf32> -> vector<16x1024xf32>
    %c0_4 = arith.constant 0 : index
    %c0_5 = arith.constant 0 : index
    %5 = vector.load %arg3[%c0_4, %c0_5] : memref<1x1024xf32, #tpu.memory_space<vmem>>, vector<1x1024xf32>
    %6 = vector.broadcast %5 : vector<1x1024xf32> to vector<16x1024xf32>
    %7 = arith.addf %4, %6 : vector<16x1024xf32>
    %cst_6 = arith.constant 0.000000e+00 : f32
    %8 = vector.broadcast %cst_6 : f32 to vector<16x1024xf32>
    %9 = arith.maximumf %7, %8 : vector<16x1024xf32>
    %10 = arith.truncf %9 : vector<16x1024xf32> to vector<16x1024xbf16>
    %c0_7 = arith.constant 0 : index
    %c0_8 = arith.constant 0 : index
    %11 = vector.load %arg4[%c0_7, %c0_8] : memref<1024x256xbf16, #tpu.memory_space<vmem>>, vector<1024x256xbf16>
    %cst_9 = arith.constant dense<0.000000e+00> : vector<16x256xf32>
    %12 = tpu.matmul %10, %11, %cst_9 {dimension_numbers = #tpu.dot_dimension_numbers<[1], [0], [0], [1], [0, 0, 1, 1], [], []>} : vector<16x1024xbf16>, vector<1024x256xbf16>, vector<16x256xf32> -> vector<16x256xf32>
    %13 = arith.addf %2, %12 : vector<16x256xf32>
    %14 = arith.addf %0, %13 : vector<16x256xf32>
    %c0_10 = arith.constant 0 : index
    %c0_11 = arith.constant 0 : index
    %15 = vector.load %arg5[%c0_10, %c0_11] : memref<1x256xf32, #tpu.memory_space<vmem>>, vector<1x256xf32>
    %16 = vector.broadcast %15 : vector<1x256xf32> to vector<16x256xf32>
    %17 = arith.addf %14, %16 : vector<16x256xf32>
    %cst_12 = arith.constant dense<0.000000e+00> : vector<16xf32>
    %18 = vector.multi_reduction <add>, %17, %cst_12 [1] : vector<16x256xf32> to vector<16xf32>
    %19 = vector.shape_cast %18 : vector<16xf32> to vector<16x1xf32>
    %cst_13 = arith.constant 2.560000e+02 : f32
    %20 = vector.broadcast %cst_13 : f32 to vector<16x1xf32>
    %21 = arith.divf %19, %20 : vector<16x1xf32>
    %22 = vector.broadcast %21 : vector<16x1xf32> to vector<16x256xf32>
    %23 = arith.subf %17, %22 : vector<16x256xf32>
    %24 = vector.broadcast %21 : vector<16x1xf32> to vector<16x256xf32>
    %25 = arith.subf %17, %24 : vector<16x256xf32>
    %26 = arith.mulf %23, %25 : vector<16x256xf32>
    %cst_14 = arith.constant dense<0.000000e+00> : vector<16xf32>
    %27 = vector.multi_reduction <add>, %26, %cst_14 [1] : vector<16x256xf32> to vector<16xf32>
    %28 = vector.shape_cast %27 : vector<16xf32> to vector<16x1xf32>
    %cst_15 = arith.constant 2.560000e+02 : f32
    %29 = vector.broadcast %cst_15 : f32 to vector<16x1xf32>
    %30 = arith.divf %28, %29 : vector<16x1xf32>
    %31 = vector.broadcast %21 : vector<16x1xf32> to vector<16x256xf32>
    %32 = arith.subf %17, %31 : vector<16x256xf32>
    %cst_16 = arith.constant 9.99999974E-6 : f32
    %33 = vector.broadcast %cst_16 : f32 to vector<16x1xf32>
    %34 = arith.addf %30, %33 : vector<16x1xf32>
    %35 = math.rsqrt %34 : vector<16x1xf32>
    %36 = vector.broadcast %35 : vector<16x1xf32> to vector<16x256xf32>
    %37 = arith.mulf %32, %36 : vector<16x256xf32>
    %c0_17 = arith.constant 0 : index
    %c0_18 = arith.constant 0 : index
    %38 = vector.load %arg6[%c0_17, %c0_18] : memref<1x256xf32, #tpu.memory_space<vmem>>, vector<1x256xf32>
    %39 = vector.broadcast %38 : vector<1x256xf32> to vector<16x256xf32>
    %40 = arith.mulf %37, %39 : vector<16x256xf32>
    %c0_19 = arith.constant 0 : index
    %c0_20 = arith.constant 0 : index
    %41 = vector.load %arg7[%c0_19, %c0_20] : memref<1x256xf32, #tpu.memory_space<vmem>>, vector<1x256xf32>
    %42 = vector.broadcast %41 : vector<1x256xf32> to vector<16x256xf32>
    %43 = arith.addf %40, %42 : vector<16x256xf32>
    %c0_21 = arith.constant 0 : index
    %c0_22 = arith.constant 0 : index
    %44 = vector.load %arg8[%c0_21, %c0_22] : memref<16x256xf32, #tpu.memory_space<vmem>>, vector<16x256xf32>
    tpu.vector_store %arg8[%c0_21, %c0_22], %43 {strides = array<i32>} : memref<16x256xf32, #tpu.memory_space<vmem>>, vector<16x256xf32>,
    return
  }
  func.func @transform_0(%arg0: i32) -> (i32, i32) {
    %c0_i32 = arith.constant 0 : i32
    %c0_i32_0 = arith.constant 0 : i32
    return %arg0, %c0_i32 : i32, i32
  }
  func.func @transform_1(%arg0: i32) -> (i32, i32) {
    %c0_i32 = arith.constant 0 : i32
    %c0_i32_0 = arith.constant 0 : i32
    %c0_i32_1 = arith.constant 0 : i32
    return %c0_i32, %c0_i32_0 : i32, i32
  }
  func.func @transform_2(%arg0: i32) -> (i32, i32) {
    %c0_i32 = arith.constant 0 : i32
    %c0_i32_0 = arith.constant 0 : i32
    %c0_i32_1 = arith.constant 0 : i32
    return %c0_i32, %c0_i32_0 : i32, i32
  }
  func.func @transform_3(%arg0: i32) -> (i32, i32) {
    %c0_i32 = arith.constant 0 : i32
    %c0_i32_0 = arith.constant 0 : i32
    %c0_i32_1 = arith.constant 0 : i32
    return %c0_i32, %c0_i32_0 : i32, i32
  }
  func.func @transform_4(%arg0: i32) -> (i32, i32) {
    %c0_i32 = arith.constant 0 : i32
    %c0_i32_0 = arith.constant 0 : i32
    %c0_i32_1 = arith.constant 0 : i32
    return %c0_i32, %c0_i32_0 : i32, i32
  }
  func.func @transform_5(%arg0: i32) -> (i32, i32) {
    %c0_i32 = arith.constant 0 : i32
    %c0_i32_0 = arith.constant 0 : i32
    %c0_i32_1 = arith.constant 0 : i32
    return %c0_i32, %c0_i32_0 : i32, i32
  }
  func.func @transform_6(%arg0: i32) -> (i32, i32) {
    %c0_i32 = arith.constant 0 : i32
    %c0_i32_0 = arith.constant 0 : i32
    %c0_i32_1 = arith.constant 0 : i32
    return %c0_i32, %c0_i32_0 : i32, i32
  }
  func.func @transform_7(%arg0: i32) -> (i32, i32) {
    %c0_i32 = arith.constant 0 : i32
    %c0_i32_0 = arith.constant 0 : i32
    return %arg0, %c0_i32 : i32, i32
  }
}

</mosaic_0001>

<llo_original>
// kernel: _ffn_impl.1
$region0: #{_ffn_impl.1}
  #allocation0 [shape = 'u32[]', space=smem, size = 0x4, offset = 0x4, fixed_abs, tag = 'smem constant byte address 0x4 - core index']
  #allocation1 [shape = 'u32[72,128]{1,0:T(1,128)}', space=vmem, size = 0x9000, scoped, tag = 'internal scratch']
  %s0 = inlined_call_operand.hbm [shape: f32[16,256], index: 0, kind: input, shape index: {}]
  %s1 = inlined_call_operand.hbm [shape: bf16[256,1024], index: 1, kind: input, shape index: {}]
  %s2 = inlined_call_operand.hbm [shape: f32[1,1024], index: 2, kind: input, shape index: {}]
  %s3 = inlined_call_operand.hbm [shape: bf16[1024,256], index: 3, kind: input, shape index: {}]
  %s4 = inlined_call_operand.vmem [shape: f32[1,256], index: 4, kind: input, shape index: {}]
  %s5 = inlined_call_operand.vmem [shape: f32[1,256], index: 5, kind: input, shape index: {}]
  %s6 = inlined_call_operand.hbm [shape: f32[1,256], index: 6, kind: input, shape index: {}]
  %s7 = inlined_call_operand.hbm [shape: f32[16,256], index: 7, kind: output, shape index: {}]
  %s8 = sld [smem:[#allocation0]]
  $region58: #{_ffn_impl.1} parent=0
    _
  %s10 = ssub.s32 1, %s8
  %s11 = scalar_select 0, %s10, %s8
  $region1: #{_ffn_impl.1} parent=0
    #allocation2 [shape = 'u8[16384]{0}', space=vmem, size = 0x4000, scoped, tag = 'input window, operand 0, single buffered']
    #allocation3 [shape = 's32[1]{0}', space=sflag, size = 0x4, scoped, tag = 'scoped memory for _ffn_impl.1']
    #allocation4 [shape = 's32[1]{0}', space=sflag, size = 0x4, scoped, tag = 'scoped memory for _ffn_impl.1']
    #allocation5 [shape = 'u8[524288]{0}', space=vmem, size = 0x80000, scoped, tag = 'input window, operand 1, single buffered']
    #allocation6 [shape = 's32[1]{0}', space=sflag, size = 0x4, scoped, tag = 'scoped memory for _ffn_impl.1']
    #allocation7 [shape = 'u8[4096]{0}', space=vmem, size = 0x1000, scoped, tag = 'input window, operand 2, single buffered']
    #allocation8 [shape = 'u8[524288]{0}', space=vmem, size = 0x80000, scoped, tag = 'input window, operand 3, single buffered']
    #allocation9 [shape = 's32[1]{0}', space=sflag, size = 0x4, scoped, tag = 'scoped memory for _ffn_impl.1']
    #allocation10 [shape = 'u8[1024]{0}', space=vmem, size = 0x400, scoped, tag = 'input window, operand 6, single buffered']
    #allocation11 [shape = 'u8[16384]{0}', space=vmem, size = 0x4000, scoped, tag = 'output window, operand 0, single buffered']
    %12 = vsyncpa [#allocation3], 0
    %13 = vsyncpa [#allocation6], 0
    %14 = vsyncpa [#allocation9], 0
    %15 = vsyncpa [#allocation4], 0
    // Predicated region
    $region2: #{_ffn_impl.1} parent=1 // pred_check
      _
    $region3: #{_ffn_impl.1} parent=1 // pred_check_branch
      %17 = sbr.rel (0) target = $region5
    $region4: #{_ffn_impl.1} parent=1 // pred_region
      %19 = vsyncadd [#allocation3], 0
      %s20 = sshll.u32 %s0, 4
      %s21 = int_to_ptr.hbm [resolvable:$true] %s20
      %s22 = sshll.u32 [#allocation2], 4
      %s23 = int_to_ptr.vmem [resolvable:$true] %s22
      %28 = dma.hbm_to_vmem [thread:$0]  %s21, 512, %s23, [#allocation3], 256, 256, 16
    $region5: #{_ffn_impl.1} parent=1 // pred_fallthru
      _
    // Predicated region
    $region6: #{_ffn_impl.1} parent=1 // pred_check
      _
    $region7: #{_ffn_impl.1} parent=1 // pred_check_branch
      %30 = sbr.rel (0) target = $region9
    $region8: #{_ffn_impl.1} parent=1 // pred_region
      %32 = vsyncadd [#allocation6], 0
      %s33 = sshll.u32 %s1, 4
      %s34 = int_to_ptr.hbm [resolvable:$true] %s33
      %s35 = sshll.u32 [#allocation5], 4
      %s36 = int_to_ptr.vmem [resolvable:$true] %s35
      %41 = dma.hbm_to_vmem [thread:$0]  %s34, 16384, %s36, [#allocation6], 512, 512, 32
    $region9: #{_ffn_impl.1} parent=1 // pred_fallthru
      _
    // Predicated region
    $region10: #{_ffn_impl.1} parent=1 // pred_check
      _
    $region11: #{_ffn_impl.1} parent=1 // pred_check_branch
      %43 = sbr.rel (0) target = $region13
    $region12: #{_ffn_impl.1} parent=1 // pred_region
      %45 = vsyncadd [#allocation6], 0
      %s47 = sshll.u32 %s2, 4
      %s48 = int_to_ptr.hbm [resolvable:$true] %s47
      %s49 = sshll.u32 [#allocation7], 4
      %s50 = int_to_ptr.vmem [resolvable:$true] %s49
      %52 = dma.hbm_to_vmem [thread:$0]  %s48, 128, %s50, [#allocation6]
    $region13: #{_ffn_impl.1} parent=1 // pred_fallthru
      _
    // Predicated region
    $region14: #{_ffn_impl.1} parent=1 // pred_check
      _
    $region15: #{_ffn_impl.1} parent=1 // pred_check_branch
      %54 = sbr.rel (0) target = $region17
    $region16: #{_ffn_impl.1} parent=1 // pred_region
      %56 = vsyncadd [#allocation9], 0
      %s57 = sshll.u32 %s3, 4
      %s58 = int_to_ptr.hbm [resolvable:$true] %s57
      %s59 = sshll.u32 [#allocation8], 4
      %s60 = int_to_ptr.vmem [resolvable:$true] %s59
      %65 = dma.hbm_to_vmem [thread:$0]  %s58, 16384, %s60, [#allocation9], 128, 128, 8
    $region17: #{_ffn_impl.1} parent=1 // pred_fallthru
      _
    // Predicated region
    $region18: #{_ffn_impl.1} parent=1 // pred_check
      _
    $region19: #{_ffn_impl.1} parent=1 // pred_check_branch
      %67 = sbr.rel (0) target = $region21
    $region20: #{_ffn_impl.1} parent=1 // pred_region
      _
    $region21: #{_ffn_impl.1} parent=1 // pred_fallthru
      _
    // Predicated region
    $region22: #{_ffn_impl.1} parent=1 // pred_check
      _
    $region23: #{_ffn_impl.1} parent=1 // pred_check_branch
      %69 = sbr.rel (0) target = $region25
    $region24: #{_ffn_impl.1} parent=1 // pred_region
      _
    $region25: #{_ffn_impl.1} parent=1 // pred_fallthru
      _
    // Predicated region
    $region26: #{_ffn_impl.1} parent=1 // pred_check
      _
    $region27: #{_ffn_impl.1} parent=1 // pred_check_branch
      %71 = sbr.rel (0) target = $region29
    $region28: #{_ffn_impl.1} parent=1 // pred_region
      %73 = vsyncadd [#allocation9], 0
      %s75 = sshll.u32 %s6, 4
      %s76 = int_to_ptr.hbm [resolvable:$true] %s75
      %s77 = sshll.u32 [#allocation10], 4
      %s78 = int_to_ptr.vmem [resolvable:$true] %s77
      %80 = dma.hbm_to_vmem [thread:$0]  %s76, 32, %s78, [#allocation9]
    $region29: #{_ffn_impl.1} parent=1 // pred_fallthru
      _
    // Predicated region
    $region30: #{_ffn_impl.1} parent=1 // pred_check
      _
    $region31: #{_ffn_impl.1} parent=1 // pred_check_branch
      %82 = sbr.rel (0) target = $region33
    $region32: #{_ffn_impl.1} parent=1 // pred_region
      %84 = dma.done [#allocation3], 512
    $region33: #{_ffn_impl.1} parent=1 // pred_fallthru
      _
    // Predicated region
    $region34: #{_ffn_impl.1} parent=1 // pred_check
      _
    $region35: #{_ffn_impl.1} parent=1 // pred_check_branch
      %86 = sbr.rel (0) target = $region37
    $region36: #{_ffn_impl.1} parent=1 // pred_region
      %88 = dma.done [#allocation6], 16384
    $region37: #{_ffn_impl.1} parent=1 // pred_fallthru
      _
    // Predicated region
    $region38: #{_ffn_impl.1} parent=1 // pred_check
      _
    $region39: #{_ffn_impl.1} parent=1 // pred_check_branch
      %90 = sbr.rel (0) target = $region41
    $region40: #{_ffn_impl.1} parent=1 // pred_region
      %92 = dma.done [#allocation6], 128
    $region41: #{_ffn_impl.1} parent=1 // pred_fallthru
      _
    // Predicated region
    $region42: #{_ffn_impl.1} parent=1 // pred_check
      _
    $region43: #{_ffn_impl.1} parent=1 // pred_check_branch
      %94 = sbr.rel (0) target = $region45
    $region44: #{_ffn_impl.1} parent=1 // pred_region
      %96 = dma.done [#allocation9], 16384
    $region45: #{_ffn_impl.1} parent=1 // pred_fallthru
      _
    // Predicated region
    $region46: #{_ffn_impl.1} parent=1 // pred_check
      _
    $region47: #{_ffn_impl.1} parent=1 // pred_check_branch
      %98 = sbr.rel (0) target = $region49
    $region48: #{_ffn_impl.1} parent=1 // pred_region
      %100 = dma.done [#allocation9], 32
    $region49: #{_ffn_impl.1} parent=1 // pred_fallthru
      _
    %v101 = vld [vmem:[#allocation2] sm:$0xff]
    %v102 = vld [vmem:[#allocation2 + $0x8] sm:$0xff]
    %v103 = vld [vmem:[#allocation2 + $0x10] sm:$0xff]
    %v104 = vld [vmem:[#allocation2 + $0x18] sm:$0xff]
    %v105 = vpack.c.bf16 %v103, %v101
    %v106 = vpack.c.bf16 %v104, %v102
    %v107 = vld [vmem:[#allocation5] sm:$0xff]
    %v108 = vld [vmem:[#allocation5 + $0x8] sm:$0xff]
    %v109 = vld [vmem:[#allocation5 + $0x10] sm:$0xff]
    %v110 = vld [vmem:[#allocation5 + $0x18] sm:$0xff]
    %v111 = vld [vmem:[#allocation5 + $0x20] sm:$0xff]
    %v112 = vld [vmem:[#allocation5 + $0x28] sm:$0xff]
    %v113 = vld [vmem:[#allocation5 + $0x30] sm:$0xff]
    %v114 = vld [vmem:[#allocation5 + $0x38] sm:$0xff]
    %v115 = vld [vmem:[#allocation5 + $0x40] sm:$0xff]
    %v116 = vld [vmem:[#allocation5 + $0x48] sm:$0xff]
    %v117 = vld [vmem:[#allocation5 + $0x50] sm:$0xff]
    %v118 = vld [vmem:[#allocation5 + $0x58] sm:$0xff]
    %v119 = vld [vmem:[#allocation5 + $0x60] sm:$0xff]
    %v120 = vld [vmem:[#allocation5 + $0x68] sm:$0xff]
    %v121 = vld [vmem:[#allocation5 + $0x70] sm:$0xff]
    %v122 = vld [vmem:[#allocation5 + $0x78] sm:$0xff]
    %v123 = vld [vmem:[#allocation5 + $0x80] sm:$0xff]
    %v124 = vld [vmem:[#allocation5 + $0x88] sm:$0xff]
    %v125 = vld [vmem:[#allocation5 + $0x90] sm:$0xff]
    %v126 = vld [vmem:[#allocation5 + $0x98] sm:$0xff]
    %v127 = vld [vmem:[#allocation5 + $0xa0] sm:$0xff]
    %v128 = vld [vmem:[#allocation5 + $0xa8] sm:$0xff]
    %v129 = vld [vmem:[#allocation5 + $0xb0] sm:$0xff]
    %v130 = vld [vmem:[#allocation5 + $0xb8] sm:$0xff]
    %v131 = vld [vmem:[#allocation5 + $0xc0] sm:$0xff]
    %v132 = vld [vmem:[#allocation5 + $0xc8] sm:$0xff]
    %v133 = vld [vmem:[#allocation5 + $0xd0] sm:$0xff]
    %v134 = vld [vmem:[#allocation5 + $0xd8] sm:$0xff]
    %v135 = vld [vmem:[#allocation5 + $0xe0] sm:$0xff]
    %v136 = vld [vmem:[#allocation5 + $0xe8] sm:$0xff]
    %v137 = vld [vmem:[#allocation5 + $0xf0] sm:$0xff]
    %v138 = vld [vmem:[#allocation5 + $0xf8] sm:$0xff]
    %v139 = vld [vmem:[#allocation5 + $0x100] sm:$0xff]
    %v140 = vld [vmem:[#allocation5 + $0x108] sm:$0xff]
    %v141 = vld [vmem:[#allocation5 + $0x110] sm:$0xff]
    %v142 = vld [vmem:[#allocation5 + $0x118] sm:$0xff]
    %v143 = vld [vmem:[#allocation5 + $0x120] sm:$0xff]
    %v144 = vld [vmem:[#allocation5 + $0x128] sm:$0xff]
    %v145 = vld [vmem:[#allocation5 + $0x130] sm:$0xff]
    %v146 = vld [vmem:[#allocation5 + $0x138] sm:$0xff]
    %v147 = vld [vmem:[#allocation5 + $0x140] sm:$0xff]
    %v148 = vld [vmem:[#allocation5 + $0x148] sm:$0xff]
    %v149 = vld [vmem:[#allocation5 + $0x150] sm:$0xff]
    %v150 = vld [vmem:[#allocation5 + $0x158] sm:$0xff]
    %v151 = vld [vmem:[#allocation5 + $0x160] sm:$0xff]
    %v152 = vld [vmem:[#allocation5 + $0x168] sm:$0xff]
    %v153 = vld [vmem:[#allocation5 + $0x170] sm:$0xff]
    %v154 = vld [vmem:[#allocation5 + $0x178] sm:$0xff]
    %v155 = vld [vmem:[#allocation5 + $0x180] sm:$0xff]
    %v156 = vld [vmem:[#allocation5 + $0x188] sm:$0xff]
    %v157 = vld [vmem:[#allocation5 + $0x190] sm:$0xff]
    %v158 = vld [vmem:[#allocation5 + $0x198] sm:$0xff]
    %v159 = vld [vmem:[#allocation5 + $0x1a0] sm:$0xff]
    %v160 = vld [vmem:[#allocation5 + $0x1a8] sm:$0xff]
    %v161 = vld [vmem:[#allocation5 + $0x1b0] sm:$0xff]
    %v162 = vld [vmem:[#allocation5 + $0x1b8] sm:$0xff]
    %v163 = vld [vmem:[#allocation5 + $0x1c0] sm:$0xff]
    %v164 = vld [vmem:[#allocation5 + $0x1c8] sm:$0xff]
    %v165 = vld [vmem:[#allocation5 + $0x1d0] sm:$0xff]
    %v166 = vld [vmem:[#allocation5 + $0x1d8] sm:$0xff]
    %v167 = vld [vmem:[#allocation5 + $0x1e0] sm:$0xff]
    %v168 = vld [vmem:[#allocation5 + $0x1e8] sm:$0xff]
    %v169 = vld [vmem:[#allocation5 + $0x1f0] sm:$0xff]
    %v170 = vld [vmem:[#allocation5 + $0x1f8] sm:$0xff]
    %v171 = vld [vmem:[#allocation5 + $0x200] sm:$0xff]
    %v172 = vld [vmem:[#allocation5 + $0x208] sm:$0xff]
    %v173 = vld [vmem:[#allocation5 + $0x210] sm:$0xff]
    %v174 = vld [vmem:[#allocation5 + $0x218] sm:$0xff]
    %v175 = vld [vmem:[#allocation5 + $0x220] sm:$0xff]
    %v176 = vld [vmem:[#allocation5 + $0x228] sm:$0xff]
    %v177 = vld [vmem:[#allocation5 + $0x230] sm:$0xff]
    %v178 = vld [vmem:[#allocation5 + $0x238] sm:$0xff]
    %v179 = vld [vmem:[#allocation5 + $0x240] sm:$0xff]
    %v180 = vld [vmem:[#allocation5 + $0x248] sm:$0xff]
    %v181 = vld [vmem:[#allocation5 + $0x250] sm:$0xff]
    %v182 = vld [vmem:[#allocation5 + $0x258] sm:$0xff]
    %v183 = vld [vmem:[#allocation5 + $0x260] sm:$0xff]
    %v184 = vld [vmem:[#allocation5 + $0x268] sm:$0xff]
    %v185 = vld [vmem:[#allocation5 + $0x270] sm:$0xff]
    %v186 = vld [vmem:[#allocation5 + $0x278] sm:$0xff]
    %v187 = vld [vmem:[#allocation5 + $0x280] sm:$0xff]
    %v188 = vld [vmem:[#allocation5 + $0x288] sm:$0xff]
    %v189 = vld [vmem:[#allocation5 + $0x290] sm:$0xff]
    %v190 = vld [vmem:[#allocation5 + $0x298] sm:$0xff]
    %v191 = vld [vmem:[#allocation5 + $0x2a0] sm:$0xff]
    %v192 = vld [vmem:[#allocation5 + $0x2a8] sm:$0xff]
    %v193 = vld [vmem:[#allocation5 + $0x2b0] sm:$0xff]
    %v194 = vld [vmem:[#allocation5 + $0x2b8] sm:$0xff]
    %v195 = vld [vmem:[#allocation5 + $0x2c0] sm:$0xff]
    %v196 = vld [vmem:[#allocation5 + $0x2c8] sm:$0xff]
    %v197 = vld [vmem:[#allocation5 + $0x2d0] sm:$0xff]
    %v198 = vld [vmem:[#allocation5 + $0x2d8] sm:$0xff]
    %v199 = vld [vmem:[#allocation5 + $0x2e0] sm:$0xff]
    %v200 = vld [vmem:[#allocation5 + $0x2e8] sm:$0xff]
    %v201 = vld [vmem:[#allocation5 + $0x2f0] sm:$0xff]
    %v202 = vld [vmem:[#allocation5 + $0x2f8] sm:$0xff]
    %v203 = vld [vmem:[#allocation5 + $0x300] sm:$0xff]
    %v204 = vld [vmem:[#allocation5 + $0x308] sm:$0xff]
    %v205 = vld [vmem:[#allocation5 + $0x310] sm:$0xff]
    %v206 = vld [vmem:[#allocation5 + $0x318] sm:$0xff]
    %v207 = vld [vmem:[#allocation5 + $0x320] sm:$0xff]
    %v208 = vld [vmem:[#allocation5 + $0x328] sm:$0xff]
    %v209 = vld [vmem:[#allocation5 + $0x330] sm:$0xff]
    %v210 = vld [vmem:[#allocation5 + $0x338] sm:$0xff]
    %v211 = vld [vmem:[#allocation5 + $0x340] sm:$0xff]
    %v212 = vld [vmem:[#allocation5 + $0x348] sm:$0xff]
    %v213 = vld [vmem:[#allocation5 + $0x350] sm:$0xff]
    %v214 = vld [vmem:[#allocation5 + $0x358] sm:$0xff]
    %v215 = vld [vmem:[#allocation5 + $0x360] sm:$0xff]
    %v216 = vld [vmem:[#allocation5 + $0x368] sm:$0xff]
    %v217 = vld [vmem:[#allocation5 + $0x370] sm:$0xff]
    %v218 = vld [vmem:[#allocation5 + $0x378] sm:$0xff]
    %v219 = vld [vmem:[#allocation5 + $0x380] sm:$0xff]
    %v220 = vld [vmem:[#allocation5 + $0x388] sm:$0xff]
    %v221 = vld [vmem:[#allocation5 + $0x390] sm:$0xff]
    %v222 = vld [vmem:[#allocation5 + $0x398] sm:$0xff]
    %v223 = vld [vmem:[#allocation5 + $0x3a0] sm:$0xff]
    %v224 = vld [vmem:[#allocation5 + $0x3a8] sm:$0xff]
    %v225 = vld [vmem:[#allocation5 + $0x3b0] sm:$0xff]
    %v226 = vld [vmem:[#allocation5 + $0x3b8] sm:$0xff]
    %v227 = vld [vmem:[#allocation5 + $0x3c0] sm:$0xff]
    %v228 = vld [vmem:[#allocation5 + $0x3c8] sm:$0xff]
    %v229 = vld [vmem:[#allocation5 + $0x3d0] sm:$0xff]
    %v230 = vld [vmem:[#allocation5 + $0x3d8] sm:$0xff]
    %v231 = vld [vmem:[#allocation5 + $0x3e0] sm:$0xff]
    %v232 = vld [vmem:[#allocation5 + $0x3e8] sm:$0xff]
    %v233 = vld [vmem:[#allocation5 + $0x3f0] sm:$0xff]
    %v234 = vld [vmem:[#allocation5 + $0x3f8] sm:$0xff]
    %v235 = vld [vmem:[#allocation7] sm:$0xff]
    %v237 = vperm.slane %v235, 0
    %v238 = vperm.slane %v235, 1
    %v239 = vperm.slane %v235, 2
    %v240 = vperm.slane %v235, 3
    %v241 = vperm.slane %v235, 4
    %v242 = vperm.slane %v235, 5
    %v243 = vperm.slane %v235, 6
    %v244 = vperm.slane %v235, 7
    %v381 = vunpack.c.l.b16 %v107
    %v382 = vunpack.c.h.b16 %v107
    %v383 = vunpack.c.l.b16 %v108
    %v384 = vunpack.c.h.b16 %v108
    %v385 = vunpack.c.l.b16 %v109
    %v386 = vunpack.c.h.b16 %v109
    %v387 = vunpack.c.l.b16 %v110
    %v388 = vunpack.c.h.b16 %v110
    %v389 = vunpack.c.l.b16 %v111
    %v390 = vunpack.c.h.b16 %v111
    %v391 = vunpack.c.l.b16 %v112
    %v392 = vunpack.c.h.b16 %v112
    %v393 = vunpack.c.l.b16 %v113
    %v394 = vunpack.c.h.b16 %v113
    %v395 = vunpack.c.l.b16 %v114
    %v396 = vunpack.c.h.b16 %v114
    %v397 = vunpack.c.l.b16 %v115
    %v398 = vunpack.c.h.b16 %v115
    %v399 = vunpack.c.l.b16 %v116
    %v400 = vunpack.c.h.b16 %v116
    %v401 = vunpack.c.l.b16 %v117
    %v402 = vunpack.c.h.b16 %v117
    %v403 = vunpack.c.l.b16 %v118
    %v404 = vunpack.c.h.b16 %v118
    %v405 = vunpack.c.l.b16 %v119
    %v406 = vunpack.c.h.b16 %v119
    %v407 = vunpack.c.l.b16 %v120
    %v408 = vunpack.c.h.b16 %v120
    %v409 = vunpack.c.l.b16 %v121
    %v410 = vunpack.c.h.b16 %v121
    %v411 = vunpack.c.l.b16 %v122
    %v412 = vunpack.c.h.b16 %v122
    %v413 = vunpack.c.l.b16 %v123
    %v414 = vunpack.c.h.b16 %v123
    %v415 = vunpack.c.l.b16 %v124
    %v416 = vunpack.c.h.b16 %v124
    %v417 = vunpack.c.l.b16 %v125
    %v418 = vunpack.c.h.b16 %v125
    %v419 = vunpack.c.l.b16 %v126
    %v420 = vunpack.c.h.b16 %v126
    %v421 = vunpack.c.l.b16 %v127
    %v422 = vunpack.c.h.b16 %v127
    %v423 = vunpack.c.l.b16 %v128
    %v424 = vunpack.c.h.b16 %v128
    %v425 = vunpack.c.l.b16 %v129
    %v426 = vunpack.c.h.b16 %v129
    %v427 = vunpack.c.l.b16 %v130
    %v428 = vunpack.c.h.b16 %v130
    %v429 = vunpack.c.l.b16 %v131
    %v430 = vunpack.c.h.b16 %v131
    %v431 = vunpack.c.l.b16 %v132
    %v432 = vunpack.c.h.b16 %v132
    %v433 = vunpack.c.l.b16 %v133
    %v434 = vunpack.c.h.b16 %v133
    %v435 = vunpack.c.l.b16 %v134
    %v436 = vunpack.c.h.b16 %v134
    %v437 = vunpack.c.l.b16 %v135
    %v438 = vunpack.c.h.b16 %v135
    %v439 = vunpack.c.l.b16 %v136
    %v440 = vunpack.c.h.b16 %v136
    %v441 = vunpack.c.l.b16 %v137
    %v442 = vunpack.c.h.b16 %v137
    %v443 = vunpack.c.l.b16 %v138
    %v444 = vunpack.c.h.b16 %v138
    %v445 = vunpack.c.l.b16 %v139
    %v446 = vunpack.c.h.b16 %v139
    %v447 = vunpack.c.l.b16 %v140
    %v448 = vunpack.c.h.b16 %v140
    %v449 = vunpack.c.l.b16 %v141
    %v450 = vunpack.c.h.b16 %v141
    %v451 = vunpack.c.l.b16 %v142
    %v452 = vunpack.c.h.b16 %v142
    %v453 = vunpack.c.l.b16 %v143
    %v454 = vunpack.c.h.b16 %v143
    %v455 = vunpack.c.l.b16 %v144
    %v456 = vunpack.c.h.b16 %v144
    %v457 = vunpack.c.l.b16 %v145
    %v458 = vunpack.c.h.b16 %v145
    %v459 = vunpack.c.l.b16 %v146
    %v460 = vunpack.c.h.b16 %v146
    %v461 = vunpack.c.l.b16 %v147
    %v462 = vunpack.c.h.b16 %v147
    %v463 = vunpack.c.l.b16 %v148
    %v464 = vunpack.c.h.b16 %v148
    %v465 = vunpack.c.l.b16 %v149
    %v466 = vunpack.c.h.b16 %v149
    %v467 = vunpack.c.l.b16 %v150
    %v468 = vunpack.c.h.b16 %v150
    %v469 = vunpack.c.l.b16 %v151
    %v470 = vunpack.c.h.b16 %v151
    %v471 = vunpack.c.l.b16 %v152
    %v472 = vunpack.c.h.b16 %v152
    %v473 = vunpack.c.l.b16 %v153
    %v474 = vunpack.c.h.b16 %v153
    %v475 = vunpack.c.l.b16 %v154
    %v476 = vunpack.c.h.b16 %v154
    %v477 = vunpack.c.l.b16 %v155
    %v478 = vunpack.c.h.b16 %v155
    %v479 = vunpack.c.l.b16 %v156
    %v480 = vunpack.c.h.b16 %v156
    %v481 = vunpack.c.l.b16 %v157
    %v482 = vunpack.c.h.b16 %v157
    %v483 = vunpack.c.l.b16 %v158
    %v484 = vunpack.c.h.b16 %v158
    %v485 = vunpack.c.l.b16 %v159
    %v486 = vunpack.c.h.b16 %v159
    %v487 = vunpack.c.l.b16 %v160
    %v488 = vunpack.c.h.b16 %v160
    %v489 = vunpack.c.l.b16 %v161
    %v490 = vunpack.c.h.b16 %v161
    %v491 = vunpack.c.l.b16 %v162
    %v492 = vunpack.c.h.b16 %v162
    %v493 = vunpack.c.l.b16 %v163
    %v494 = vunpack.c.h.b16 %v163
    %v495 = vunpack.c.l.b16 %v164
    %v496 = vunpack.c.h.b16 %v164
    %v497 = vunpack.c.l.b16 %v165
    %v498 = vunpack.c.h.b16 %v165
    %v499 = vunpack.c.l.b16 %v166
    %v500 = vunpack.c.h.b16 %v166
    %v501 = vunpack.c.l.b16 %v167
    %v502 = vunpack.c.h.b16 %v167
    %v503 = vunpack.c.l.b16 %v168
    %v504 = vunpack.c.h.b16 %v168
    %v505 = vunpack.c.l.b16 %v169
    %v506 = vunpack.c.h.b16 %v169
    %v507 = vunpack.c.l.b16 %v170
    %v508 = vunpack.c.h.b16 %v170
    %v509 = vunpack.c.l.b16 %v171
    %v510 = vunpack.c.h.b16 %v171
    %v511 = vunpack.c.l.b16 %v172
    %v512 = vunpack.c.h.b16 %v172
    %v513 = vunpack.c.l.b16 %v173
    %v514 = vunpack.c.h.b16 %v173
    %v515 = vunpack.c.l.b16 %v174
    %v516 = vunpack.c.h.b16 %v174
    %v517 = vunpack.c.l.b16 %v175
    %v518 = vunpack.c.h.b16 %v175
    %v519 = vunpack.c.l.b16 %v176
    %v520 = vunpack.c.h.b16 %v176
    %v521 = vunpack.c.l.b16 %v177
    %v522 = vunpack.c.h.b16 %v177
    %v523 = vunpack.c.l.b16 %v178
    %v524 = vunpack.c.h.b16 %v178
    %v525 = vunpack.c.l.b16 %v179
    %v526 = vunpack.c.h.b16 %v179
    %v527 = vunpack.c.l.b16 %v180
    %v528 = vunpack.c.h.b16 %v180
    %v529 = vunpack.c.l.b16 %v181
    %v530 = vunpack.c.h.b16 %v181
    %v531 = vunpack.c.l.b16 %v182
    %v532 = vunpack.c.h.b16 %v182
    %v533 = vunpack.c.l.b16 %v183
    %v534 = vunpack.c.h.b16 %v183
    %v535 = vunpack.c.l.b16 %v184
    %v536 = vunpack.c.h.b16 %v184
    %v537 = vunpack.c.l.b16 %v185
    %v538 = vunpack.c.h.b16 %v185
    %v539 = vunpack.c.l.b16 %v186
    %v540 = vunpack.c.h.b16 %v186
    %v541 = vunpack.c.l.b16 %v187
    %v542 = vunpack.c.h.b16 %v187
    %v543 = vunpack.c.l.b16 %v188
    %v544 = vunpack.c.h.b16 %v188
    %v545 = vunpack.c.l.b16 %v189
    %v546 = vunpack.c.h.b16 %v189
    %v547 = vunpack.c.l.b16 %v190
    %v548 = vunpack.c.h.b16 %v190
    %v549 = vunpack.c.l.b16 %v191
    %v550 = vunpack.c.h.b16 %v191
    %v551 = vunpack.c.l.b16 %v192
    %v552 = vunpack.c.h.b16 %v192
    %v553 = vunpack.c.l.b16 %v193
    %v554 = vunpack.c.h.b16 %v193
    %v555 = vunpack.c.l.b16 %v194
    %v556 = vunpack.c.h.b16 %v194
    %v557 = vunpack.c.l.b16 %v195
    %v558 = vunpack.c.h.b16 %v195
    %v559 = vunpack.c.l.b16 %v196
    %v560 = vunpack.c.h.b16 %v196
    %v561 = vunpack.c.l.b16 %v197
    %v562 = vunpack.c.h.b16 %v197
    %v563 = vunpack.c.l.b16 %v198
    %v564 = vunpack.c.h.b16 %v198
    %v565 = vunpack.c.l.b16 %v199
    %v566 = vunpack.c.h.b16 %v199
    %v567 = vunpack.c.l.b16 %v200
    %v568 = vunpack.c.h.b16 %v200
    %v569 = vunpack.c.l.b16 %v201
    %v570 = vunpack.c.h.b16 %v201
    %v571 = vunpack.c.l.b16 %v202
    %v572 = vunpack.c.h.b16 %v202
    %v573 = vunpack.c.l.b16 %v203
    %v574 = vunpack.c.h.b16 %v203
    %v575 = vunpack.c.l.b16 %v204
    %v576 = vunpack.c.h.b16 %v204
    %v577 = vunpack.c.l.b16 %v205
    %v578 = vunpack.c.h.b16 %v205
    %v579 = vunpack.c.l.b16 %v206
    %v580 = vunpack.c.h.b16 %v206
    %v581 = vunpack.c.l.b16 %v207
    %v582 = vunpack.c.h.b16 %v207
    %v583 = vunpack.c.l.b16 %v208
    %v584 = vunpack.c.h.b16 %v208
    %v585 = vunpack.c.l.b16 %v209
    %v586 = vunpack.c.h.b16 %v209
    %v587 = vunpack.c.l.b16 %v210
    %v588 = vunpack.c.h.b16 %v210
    %v589 = vunpack.c.l.b16 %v211
    %v590 = vunpack.c.h.b16 %v211
    %v591 = vunpack.c.l.b16 %v212
    %v592 = vunpack.c.h.b16 %v212
    %v593 = vunpack.c.l.b16 %v213
    %v594 = vunpack.c.h.b16 %v213
    %v595 = vunpack.c.l.b16 %v214
    %v596 = vunpack.c.h.b16 %v214
    %v597 = vunpack.c.l.b16 %v215
    %v598 = vunpack.c.h.b16 %v215
    %v599 = vunpack.c.l.b16 %v216
    %v600 = vunpack.c.h.b16 %v216
    %v601 = vunpack.c.l.b16 %v217
    %v602 = vunpack.c.h.b16 %v217
    %v603 = vunpack.c.l.b16 %v218
    %v604 = vunpack.c.h.b16 %v218
    %v605 = vunpack.c.l.b16 %v219
    %v606 = vunpack.c.h.b16 %v219
    %v607 = vunpack.c.l.b16 %v220
    %v608 = vunpack.c.h.b16 %v220
    %v609 = vunpack.c.l.b16 %v221
    %v610 = vunpack.c.h.b16 %v221
    %v611 = vunpack.c.l.b16 %v222
    %v612 = vunpack.c.h.b16 %v222
    %v613 = vunpack.c.l.b16 %v223
    %v614 = vunpack.c.h.b16 %v223
    %v615 = vunpack.c.l.b16 %v224
    %v616 = vunpack.c.h.b16 %v224
    %v617 = vunpack.c.l.b16 %v225
    %v618 = vunpack.c.h.b16 %v225
    %v619 = vunpack.c.l.b16 %v226
    %v620 = vunpack.c.h.b16 %v226
    %v621 = vunpack.c.l.b16 %v227
    %v622 = vunpack.c.h.b16 %v227
    %v623 = vunpack.c.l.b16 %v228
    %v624 = vunpack.c.h.b16 %v228
    %v625 = vunpack.c.l.b16 %v229
    %v626 = vunpack.c.h.b16 %v229
    %v627 = vunpack.c.l.b16 %v230
    %v628 = vunpack.c.h.b16 %v230
    %v629 = vunpack.c.l.b16 %v231
    %v630 = vunpack.c.h.b16 %v231
    %v631 = vunpack.c.l.b16 %v232
    %v632 = vunpack.c.h.b16 %v232
    %v633 = vunpack.c.l.b16 %v233
    %v634 = vunpack.c.h.b16 %v233
    %v635 = vunpack.c.l.b16 %v234
    %v636 = vunpack.c.h.b16 %v234
    %v637 = vpack.c.b16 %v389, %v381
    %v638 = vpack.c.b16 %v390, %v382
    %v639 = vpack.c.b16 %v391, %v383
    %v640 = vpack.c.b16 %v392, %v384
    %v641 = vpack.c.b16 %v393, %v385
    %v642 = vpack.c.b16 %v394, %v386
    %v643 = vpack.c.b16 %v395, %v387
    %v644 = vpack.c.b16 %v396, %v388
    %v645 = vpack.c.b16 %v405, %v397
    %v646 = vpack.c.b16 %v406, %v398
    %v647 = vpack.c.b16 %v407, %v399
    %v648 = vpack.c.b16 %v408, %v400
    %v649 = vpack.c.b16 %v409, %v401
    %v650 = vpack.c.b16 %v410, %v402
    %v651 = vpack.c.b16 %v411, %v403
    %v652 = vpack.c.b16 %v412, %v404
    %v653 = vpack.c.b16 %v421, %v413
    %v654 = vpack.c.b16 %v422, %v414
    %v655 = vpack.c.b16 %v423, %v415
    %v656 = vpack.c.b16 %v424, %v416
    %v657 = vpack.c.b16 %v425, %v417
    %v658 = vpack.c.b16 %v426, %v418
    %v659 = vpack.c.b16 %v427, %v419
    %v660 = vpack.c.b16 %v428, %v420
    %v661 = vpack.c.b16 %v437, %v429
    %v662 = vpack.c.b16 %v438, %v430
    %v663 = vpack.c.b16 %v439, %v431
    %v664 = vpack.c.b16 %v440, %v432
    %v665 = vpack.c.b16 %v441, %v433
    %v666 = vpack.c.b16 %v442, %v434
    %v667 = vpack.c.b16 %v443, %v435
    %v668 = vpack.c.b16 %v444, %v436
    %v669 = vpack.c.b16 %v453, %v445
    %v670 = vpack.c.b16 %v454, %v446
    %v671 = vpack.c.b16 %v455, %v447
    %v672 = vpack.c.b16 %v456, %v448
    %v673 = vpack.c.b16 %v457, %v449
    %v674 = vpack.c.b16 %v458, %v450
    %v675 = vpack.c.b16 %v459, %v451
    %v676 = vpack.c.b16 %v460, %v452
    %v677 = vpack.c.b16 %v469, %v461
    %v678 = vpack.c.b16 %v470, %v462
    %v679 = vpack.c.b16 %v471, %v463
    %v680 = vpack.c.b16 %v472, %v464
    %v681 = vpack.c.b16 %v473, %v465
    %v682 = vpack.c.b16 %v474, %v466
    %v683 = vpack.c.b16 %v475, %v467
    %v684 = vpack.c.b16 %v476, %v468
    %v685 = vpack.c.b16 %v485, %v477
    %v686 = vpack.c.b16 %v486, %v478
    %v687 = vpack.c.b16 %v487, %v479
    %v688 = vpack.c.b16 %v488, %v480
    %v689 = vpack.c.b16 %v489, %v481
    %v690 = vpack.c.b16 %v490, %v482
    %v691 = vpack.c.b16 %v491, %v483
    %v692 = vpack.c.b16 %v492, %v484
    %v693 = vpack.c.b16 %v501, %v493
    %v694 = vpack.c.b16 %v502, %v494
    %v695 = vpack.c.b16 %v503, %v495
    %v696 = vpack.c.b16 %v504, %v496
    %v697 = vpack.c.b16 %v505, %v497
    %v698 = vpack.c.b16 %v506, %v498
    %v699 = vpack.c.b16 %v507, %v499
    %v700 = vpack.c.b16 %v508, %v500
    %v701 = vpack.c.b16 %v517, %v509
    %v702 = vpack.c.b16 %v518, %v510
    %v703 = vpack.c.b16 %v519, %v511
    %v704 = vpack.c.b16 %v520, %v512
    %v705 = vpack.c.b16 %v521, %v513
    %v706 = vpack.c.b16 %v522, %v514
    %v707 = vpack.c.b16 %v523, %v515
    %v708 = vpack.c.b16 %v524, %v516
    %v709 = vpack.c.b16 %v533, %v525
    %v710 = vpack.c.b16 %v534, %v526
    %v711 = vpack.c.b16 %v535, %v527
    %v712 = vpack.c.b16 %v536, %v528
    %v713 = vpack.c.b16 %v537, %v529
    %v714 = vpack.c.b16 %v538, %v530
    %v715 = vpack.c.b16 %v539, %v531
    %v716 = vpack.c.b16 %v540, %v532
    %v717 = vpack.c.b16 %v549, %v541
    %v718 = vpack.c.b16 %v550, %v542
    %v719 = vpack.c.b16 %v551, %v543
    %v720 = vpack.c.b16 %v552, %v544
    %v721 = vpack.c.b16 %v553, %v545
    %v722 = vpack.c.b16 %v554, %v546
    %v723 = vpack.c.b16 %v555, %v547
    %v724 = vpack.c.b16 %v556, %v548
    %v725 = vpack.c.b16 %v565, %v557
    %v726 = vpack.c.b16 %v566, %v558
    %v727 = vpack.c.b16 %v567, %v559
    %v728 = vpack.c.b16 %v568, %v560
    %v729 = vpack.c.b16 %v569, %v561
    %v730 = vpack.c.b16 %v570, %v562
    %v731 = vpack.c.b16 %v571, %v563
    %v732 = vpack.c.b16 %v572, %v564
    %v733 = vpack.c.b16 %v581, %v573
    %v734 = vpack.c.b16 %v582, %v574
    %v735 = vpack.c.b16 %v583, %v575
    %v736 = vpack.c.b16 %v584, %v576
    %v737 = vpack.c.b16 %v585, %v577
    %v738 = vpack.c.b16 %v586, %v578
    %v739 = vpack.c.b16 %v587, %v579
    %v740 = vpack.c.b16 %v588, %v580
    %v741 = vpack.c.b16 %v597, %v589
    %v742 = vpack.c.b16 %v598, %v590
    %v743 = vpack.c.b16 %v599, %v591
    %v744 = vpack.c.b16 %v600, %v592
    %v745 = vpack.c.b16 %v601, %v593
    %v746 = vpack.c.b16 %v602, %v594
    %v747 = vpack.c.b16 %v603, %v595
    %v748 = vpack.c.b16 %v604, %v596
    %v749 = vpack.c.b16 %v613, %v605
    %v750 = vpack.c.b16 %v614, %v606
    %v751 = vpack.c.b16 %v615, %v607
    %v752 = vpack.c.b16 %v616, %v608
    %v753 = vpack.c.b16 %v617, %v609
    %v754 = vpack.c.b16 %v618, %v610
    %v755 = vpack.c.b16 %v619, %v611
    %v756 = vpack.c.b16 %v620, %v612
    %v757 = vpack.c.b16 %v629, %v621
    %v758 = vpack.c.b16 %v630, %v622
    %v759 = vpack.c.b16 %v631, %v623
    %v760 = vpack.c.b16 %v632, %v624
    %v761 = vpack.c.b16 %v633, %v625
    %v762 = vpack.c.b16 %v634, %v626
    %v763 = vpack.c.b16 %v635, %v627
    %v764 = vpack.c.b16 %v636, %v628
    %893 = vmatpush.bf16.msra.mxu0 %v693
    %894 = vmatpush.bf16.msra.mxu0 %v685
    %895 = vmatpush.bf16.msra.mxu0 %v677
    %896 = vmatpush.bf16.msra.mxu0 %v669
    %897 = vmatpush.bf16.msra.mxu0 %v661
    %898 = vmatpush.bf16.msra.mxu0 %v653
    %899 = vmatpush.bf16.msra.mxu0 %v645
    %900 = vmatpush.bf16.msra.mxu0 %v637
    %901 = vmatmul.bf16.gmra.mxu0 %v105
    %v902 = vpop.f32.mrf.mxu0
    %v903 = vadd.f32 %v237, %v902
    %v904 = vpop.f32.mrf.mxu0
    %v905 = vadd.f32 %v237, %v904
    %906 = vdwg.mxu0
    %907 = vmatpush.bf16.msra.mxu0 %v757
    %908 = vmatpush.bf16.msra.mxu0 %v749
    %909 = vmatpush.bf16.msra.mxu0 %v741
    %910 = vmatpush.bf16.msra.mxu0 %v733
    %911 = vmatpush.bf16.msra.mxu0 %v725
    %912 = vmatpush.bf16.msra.mxu0 %v717
    %913 = vmatpush.bf16.msra.mxu0 %v709
    %914 = vmatpush.bf16.msra.mxu0 %v701
    %915 = vmatmul.bf16.gmra.mxu0 %v106
    %v916 = vpop.f32.mrf.mxu0
    %v917 = vadd.f32 %v903, %v916
    %v918 = vpop.f32.mrf.mxu0
    %v919 = vadd.f32 %v905, %v918
    %920 = vdwg.mxu0
    %921 = vmatpush.bf16.msra.mxu0 %v694
    %922 = vmatpush.bf16.msra.mxu0 %v686
    %923 = vmatpush.bf16.msra.mxu0 %v678
    %924 = vmatpush.bf16.msra.mxu0 %v670
    %925 = vmatpush.bf16.msra.mxu0 %v662
    %926 = vmatpush.bf16.msra.mxu0 %v654
    %927 = vmatpush.bf16.msra.mxu0 %v646
    %928 = vmatpush.bf16.msra.mxu0 %v638
    %929 = vmatmul.bf16.gmra.mxu0 %v105
    %v930 = vpop.f32.mrf.mxu0
    %v931 = vadd.f32 %v238, %v930
    %v932 = vpop.f32.mrf.mxu0
    %v933 = vadd.f32 %v238, %v932
    %934 = vdwg.mxu0
    %935 = vmatpush.bf16.msra.mxu0 %v758
    %936 = vmatpush.bf16.msra.mxu0 %v750
    %937 = vmatpush.bf16.msra.mxu0 %v742
    %938 = vmatpush.bf16.msra.mxu0 %v734
    %939 = vmatpush.bf16.msra.mxu0 %v726
    %940 = vmatpush.bf16.msra.mxu0 %v718
    %941 = vmatpush.bf16.msra.mxu0 %v710
    %942 = vmatpush.bf16.msra.mxu0 %v702
    %943 = vmatmul.bf16.gmra.mxu0 %v106
    %v944 = vpop.f32.mrf.mxu0
    %v945 = vadd.f32 %v931, %v944
    %v946 = vpop.f32.mrf.mxu0
    %v947 = vadd.f32 %v933, %v946
    %948 = vdwg.mxu0
    %949 = vmatpush.bf16.msra.mxu0 %v695
    %950 = vmatpush.bf16.msra.mxu0 %v687
    %951 = vmatpush.bf16.msra.mxu0 %v679
    %952 = vmatpush.bf16.msra.mxu0 %v671
    %953 = vmatpush.bf16.msra.mxu0 %v663
    %954 = vmatpush.bf16.msra.mxu0 %v655
    %955 = vmatpush.bf16.msra.mxu0 %v647
    %956 = vmatpush.bf16.msra.mxu0 %v639
    %957 = vmatmul.bf16.gmra.mxu0 %v105
    %v958 = vpop.f32.mrf.mxu0
    %v959 = vadd.f32 %v239, %v958
    %v960 = vpop.f32.mrf.mxu0
    %v961 = vadd.f32 %v239, %v960
    %962 = vdwg.mxu0
    %963 = vmatpush.bf16.msra.mxu0 %v759
    %964 = vmatpush.bf16.msra.mxu0 %v751
    %965 = vmatpush.bf16.msra.mxu0 %v743
    %966 = vmatpush.bf16.msra.mxu0 %v735
    %967 = vmatpush.bf16.msra.mxu0 %v727
    %968 = vmatpush.bf16.msra.mxu0 %v719
    %969 = vmatpush.bf16.msra.mxu0 %v711
    %970 = vmatpush.bf16.msra.mxu0 %v703
    %971 = vmatmul.bf16.gmra.mxu0 %v106
    %v972 = vpop.f32.mrf.mxu0
    %v973 = vadd.f32 %v959, %v972
    %v974 = vpop.f32.mrf.mxu0
    %v975 = vadd.f32 %v961, %v974
    %976 = vdwg.mxu0
    %977 = vmatpush.bf16.msra.mxu0 %v696
    %978 = vmatpush.bf16.msra.mxu0 %v688
    %979 = vmatpush.bf16.msra.mxu0 %v680
    %980 = vmatpush.bf16.msra.mxu0 %v672
    %981 = vmatpush.bf16.msra.mxu0 %v664
    %982 = vmatpush.bf16.msra.mxu0 %v656
    %983 = vmatpush.bf16.msra.mxu0 %v648
    %984 = vmatpush.bf16.msra.mxu0 %v640
    %985 = vmatmul.bf16.gmra.mxu0 %v105
    %v986 = vpop.f32.mrf.mxu0
    %v987 = vadd.f32 %v240, %v986
    %v988 = vpop.f32.mrf.mxu0
    %v989 = vadd.f32 %v240, %v988
    %990 = vdwg.mxu0
    %991 = vmatpush.bf16.msra.mxu0 %v760
    %992 = vmatpush.bf16.msra.mxu0 %v752
    %993 = vmatpush.bf16.msra.mxu0 %v744
    %994 = vmatpush.bf16.msra.mxu0 %v736
    %995 = vmatpush.bf16.msra.mxu0 %v728
    %996 = vmatpush.bf16.msra.mxu0 %v720
    %997 = vmatpush.bf16.msra.mxu0 %v712
    %998 = vmatpush.bf16.msra.mxu0 %v704
    %999 = vmatmul.bf16.gmra.mxu0 %v106
    %v1000 = vpop.f32.mrf.mxu0
    %v1001 = vadd.f32 %v987, %v1000
    %v1002 = vpop.f32.mrf.mxu0
    %v1003 = vadd.f32 %v989, %v1002
    %1004 = vdwg.mxu0
    %1005 = vmatpush.bf16.msra.mxu0 %v697
    %1006 = vmatpush.bf16.msra.mxu0 %v689
    %1007 = vmatpush.bf16.msra.mxu0 %v681
    %1008 = vmatpush.bf16.msra.mxu0 %v673
    %1009 = vmatpush.bf16.msra.mxu0 %v665
    %1010 = vmatpush.bf16.msra.mxu0 %v657
    %1011 = vmatpush.bf16.msra.mxu0 %v649
    %1012 = vmatpush.bf16.msra.mxu0 %v641
    %1013 = vmatmul.bf16.gmra.mxu0 %v105
    %v1014 = vpop.f32.mrf.mxu0
    %v1015 = vadd.f32 %v241, %v1014
    %v1016 = vpop.f32.mrf.mxu0
    %v1017 = vadd.f32 %v241, %v1016
    %1018 = vdwg.mxu0
    %1019 = vmatpush.bf16.msra.mxu0 %v761
    %1020 = vmatpush.bf16.msra.mxu0 %v753
    %1021 = vmatpush.bf16.msra.mxu0 %v745
    %1022 = vmatpush.bf16.msra.mxu0 %v737
    %1023 = vmatpush.bf16.msra.mxu0 %v729
    %1024 = vmatpush.bf16.msra.mxu0 %v721
    %1025 = vmatpush.bf16.msra.mxu0 %v713
    %1026 = vmatpush.bf16.msra.mxu0 %v705
    %1027 = vmatmul.bf16.gmra.mxu0 %v106
    %v1028 = vpop.f32.mrf.mxu0
    %v1029 = vadd.f32 %v1015, %v1028
    %v1030 = vpop.f32.mrf.mxu0
    %v1031 = vadd.f32 %v1017, %v1030
    %1032 = vdwg.mxu0
    %1033 = vmatpush.bf16.msra.mxu0 %v698
    %1034 = vmatpush.bf16.msra.mxu0 %v690
    %1035 = vmatpush.bf16.msra.mxu0 %v682
    %1036 = vmatpush.bf16.msra.mxu0 %v674
    %1037 = vmatpush.bf16.msra.mxu0 %v666
    %1038 = vmatpush.bf16.msra.mxu0 %v658
    %1039 = vmatpush.bf16.msra.mxu0 %v650
    %1040 = vmatpush.bf16.msra.mxu0 %v642
    %1041 = vmatmul.bf16.gmra.mxu0 %v105
    %v1042 = vpop.f32.mrf.mxu0
    %v1043 = vadd.f32 %v242, %v1042
    %v1044 = vpop.f32.mrf.mxu0
    %v1045 = vadd.f32 %v242, %v1044
    %1046 = vdwg.mxu0
    %1047 = vmatpush.bf16.msra.mxu0 %v762
    %1048 = vmatpush.bf16.msra.mxu0 %v754
    %1049 = vmatpush.bf16.msra.mxu0 %v746
    %1050 = vmatpush.bf16.msra.mxu0 %v738
    %1051 = vmatpush.bf16.msra.mxu0 %v730
    %1052 = vmatpush.bf16.msra.mxu0 %v722
    %1053 = vmatpush.bf16.msra.mxu0 %v714
    %1054 = vmatpush.bf16.msra.mxu0 %v706
    %1055 = vmatmul.bf16.gmra.mxu0 %v106
    %v1056 = vpop.f32.mrf.mxu0
    %v1057 = vadd.f32 %v1043, %v1056
    %v1058 = vpop.f32.mrf.mxu0
    %v1059 = vadd.f32 %v1045, %v1058
    %1060 = vdwg.mxu0
    %1061 = vmatpush.bf16.msra.mxu0 %v699
    %1062 = vmatpush.bf16.msra.mxu0 %v691
    %1063 = vmatpush.bf16.msra.mxu0 %v683
    %1064 = vmatpush.bf16.msra.mxu0 %v675
    %1065 = vmatpush.bf16.msra.mxu0 %v667
    %1066 = vmatpush.bf16.msra.mxu0 %v659
    %1067 = vmatpush.bf16.msra.mxu0 %v651
    %1068 = vmatpush.bf16.msra.mxu0 %v643
    %1069 = vmatmul.bf16.gmra.mxu0 %v105
    %v1070 = vpop.f32.mrf.mxu0
    %v1071 = vadd.f32 %v243, %v1070
    %v1072 = vpop.f32.mrf.mxu0
    %v1073 = vadd.f32 %v243, %v1072
    %1074 = vdwg.mxu0
    %1075 = vmatpush.bf16.msra.mxu0 %v763
    %1076 = vmatpush.bf16.msra.mxu0 %v755
    %1077 = vmatpush.bf16.msra.mxu0 %v747
    %1078 = vmatpush.bf16.msra.mxu0 %v739
    %1079 = vmatpush.bf16.msra.mxu0 %v731
    %1080 = vmatpush.bf16.msra.mxu0 %v723
    %1081 = vmatpush.bf16.msra.mxu0 %v715
    %1082 = vmatpush.bf16.msra.mxu0 %v707
    %1083 = vmatmul.bf16.gmra.mxu0 %v106
    %v1084 = vpop.f32.mrf.mxu0
    %v1085 = vadd.f32 %v1071, %v1084
    %v1086 = vpop.f32.mrf.mxu0
    %v1087 = vadd.f32 %v1073, %v1086
    %1088 = vdwg.mxu0
    %1089 = vmatpush.bf16.msra.mxu0 %v700
    %1090 = vmatpush.bf16.msra.mxu0 %v692
    %1091 = vmatpush.bf16.msra.mxu0 %v684
    %1092 = vmatpush.bf16.msra.mxu0 %v676
    %1093 = vmatpush.bf16.msra.mxu0 %v668
    %1094 = vmatpush.bf16.msra.mxu0 %v660
    %1095 = vmatpush.bf16.msra.mxu0 %v652
    %1096 = vmatpush.bf16.msra.mxu0 %v644
    %1097 = vmatmul.bf16.gmra.mxu0 %v105
    %v1098 = vpop.f32.mrf.mxu0
    %v1099 = vadd.f32 %v244, %v1098
    %v1100 = vpop.f32.mrf.mxu0
    %v1101 = vadd.f32 %v244, %v1100
    %1102 = vdwg.mxu0
    %1103 = vmatpush.bf16.msra.mxu0 %v764
    %1104 = vmatpush.bf16.msra.mxu0 %v756
    %1105 = vmatpush.bf16.msra.mxu0 %v748
    %1106 = vmatpush.bf16.msra.mxu0 %v740
    %1107 = vmatpush.bf16.msra.mxu0 %v732
    %1108 = vmatpush.bf16.msra.mxu0 %v724
    %1109 = vmatpush.bf16.msra.mxu0 %v716
    %1110 = vmatpush.bf16.msra.mxu0 %v708
    %1111 = vmatmul.bf16.gmra.mxu0 %v106
    %v1112 = vpop.f32.mrf.mxu0
    %v1113 = vadd.f32 %v1099, %v1112
    %v1114 = vpop.f32.mrf.mxu0
    %v1115 = vadd.f32 %v1101, %v1114
    %1116 = vdwg.mxu0
    %v1117 = vmax.f32 %v917, 0.0
    %v1118 = vmax.f32 %v945, 0.0
    %v1119 = vmax.f32 %v973, 0.0
    %v1120 = vmax.f32 %v1001, 0.0
    %v1121 = vmax.f32 %v1029, 0.0
    %v1122 = vmax.f32 %v1057, 0.0
    %v1123 = vmax.f32 %v1085, 0.0
    %v1124 = vmax.f32 %v1113, 0.0
    %v1125 = vmax.f32 %v919, 0.0
    %v1126 = vmax.f32 %v947, 0.0
    %v1127 = vmax.f32 %v975, 0.0
    %v1128 = vmax.f32 %v1003, 0.0
    %v1129 = vmax.f32 %v1031, 0.0
    %v1130 = vmax.f32 %v1059, 0.0
    %v1131 = vmax.f32 %v1087, 0.0
    %v1132 = vmax.f32 %v1115, 0.0
    %v1133 = vpack.c.bf16 %v1125, %v1117
    %v1134 = vpack.c.bf16 %v1126, %v1118
    %v1135 = vpack.c.bf16 %v1127, %v1119
    %v1136 = vpack.c.bf16 %v1128, %v1120
    %v1137 = vpack.c.bf16 %v1129, %v1121
    %v1138 = vpack.c.bf16 %v1130, %v1122
    %v1139 = vpack.c.bf16 %v1131, %v1123
    %v1140 = vpack.c.bf16 %v1132, %v1124
    %v1141 = vld [vmem:[#allocation8] sm:$0xff]
    %v1142 = vld [vmem:[#allocation8 + $0x8] sm:$0xff]
    %v1143 = vld [vmem:[#allocation8 + $0x10] sm:$0xff]
    %v1144 = vld [vmem:[#allocation8 + $0x18] sm:$0xff]
    %v1145 = vld [vmem:[#allocation8 + $0x20] sm:$0xff]
    %v1146 = vld [vmem:[#allocation8 + $0x28] sm:$0xff]
    %v1147 = vld [vmem:[#allocation8 + $0x30] sm:$0xff]
    %v1148 = vld [vmem:[#allocation8 + $0x38] sm:$0xff]
    %v1149 = vld [vmem:[#allocation8 + $0x40] sm:$0xff]
    %v1150 = vld [vmem:[#allocation8 + $0x48] sm:$0xff]
    %v1151 = vld [vmem:[#allocation8 + $0x50] sm:$0xff]
    %v1152 = vld [vmem:[#allocation8 + $0x58] sm:$0xff]
    %v1153 = vld [vmem:[#allocation8 + $0x60] sm:$0xff]
    %v1154 = vld [vmem:[#allocation8 + $0x68] sm:$0xff]
    %v1155 = vld [vmem:[#allocation8 + $0x70] sm:$0xff]
    %v1156 = vld [vmem:[#allocation8 + $0x78] sm:$0xff]
    %v1157 = vld [vmem:[#allocation8 + $0x80] sm:$0xff]
    %v1158 = vld [vmem:[#allocation8 + $0x88] sm:$0xff]
    %v1159 = vld [vmem:[#allocation8 + $0x90] sm:$0xff]
    %v1160 = vld [vmem:[#allocation8 + $0x98] sm:$0xff]
    %v1161 = vld [vmem:[#allocation8 + $0xa0] sm:$0xff]
    %v1162 = vld [vmem:[#allocation8 + $0xa8] sm:$0xff]
    %v1163 = vld [vmem:[#allocation8 + $0xb0] sm:$0xff]
    %v1164 = vld [vmem:[#allocation8 + $0xb8] sm:$0xff]
    %v1165 = vld [vmem:[#allocation8 + $0xc0] sm:$0xff]
    %v1166 = vld [vmem:[#allocation8 + $0xc8] sm:$0xff]
    %v1167 = vld [vmem:[#allocation8 + $0xd0] sm:$0xff]
    %v1168 = vld [vmem:[#allocation8 + $0xd8] sm:$0xff]
    %v1169 = vld [vmem:[#allocation8 + $0xe0] sm:$0xff]
    %v1170 = vld [vmem:[#allocation8 + $0xe8] sm:$0xff]
    %v1171 = vld [vmem:[#allocation8 + $0xf0] sm:$0xff]
    %v1172 = vld [vmem:[#allocation8 + $0xf8] sm:$0xff]
    %v1173 = vld [vmem:[#allocation8 + $0x100] sm:$0xff]
    %v1174 = vld [vmem:[#allocation8 + $0x108] sm:$0xff]
    %v1175 = vld [vmem:[#allocation8 + $0x110] sm:$0xff]
    %v1176 = vld [vmem:[#allocation8 + $0x118] sm:$0xff]
    %v1177 = vld [vmem:[#allocation8 + $0x120] sm:$0xff]
    %v1178 = vld [vmem:[#allocation8 + $0x128] sm:$0xff]
    %v1179 = vld [vmem:[#allocation8 + $0x130] sm:$0xff]
    %v1180 = vld [vmem:[#allocation8 + $0x138] sm:$0xff]
    %v1181 = vld [vmem:[#allocation8 + $0x140] sm:$0xff]
    %v1182 = vld [vmem:[#allocation8 + $0x148] sm:$0xff]
    %v1183 = vld [vmem:[#allocation8 + $0x150] sm:$0xff]
    %v1184 = vld [vmem:[#allocation8 + $0x158] sm:$0xff]
    %v1185 = vld [vmem:[#allocation8 + $0x160] sm:$0xff]
    %v1186 = vld [vmem:[#allocation8 + $0x168] sm:$0xff]
    %v1187 = vld [vmem:[#allocation8 + $0x170] sm:$0xff]
    %v1188 = vld [vmem:[#allocation8 + $0x178] sm:$0xff]
    %v1189 = vld [vmem:[#allocation8 + $0x180] sm:$0xff]
    %v1190 = vld [vmem:[#allocation8 + $0x188] sm:$0xff]
    %v1191 = vld [vmem:[#allocation8 + $0x190] sm:$0xff]
    %v1192 = vld [vmem:[#allocation8 + $0x198] sm:$0xff]
    %v1193 = vld [vmem:[#allocation8 + $0x1a0] sm:$0xff]
    %v1194 = vld [vmem:[#allocation8 + $0x1a8] sm:$0xff]
    %v1195 = vld [vmem:[#allocation8 + $0x1b0] sm:$0xff]
    %v1196 = vld [vmem:[#allocation8 + $0x1b8] sm:$0xff]
    %v1197 = vld [vmem:[#allocation8 + $0x1c0] sm:$0xff]
    %v1198 = vld [vmem:[#allocation8 + $0x1c8] sm:$0xff]
    %v1199 = vld [vmem:[#allocation8 + $0x1d0] sm:$0xff]
    %v1200 = vld [vmem:[#allocation8 + $0x1d8] sm:$0xff]
    %v1201 = vld [vmem:[#allocation8 + $0x1e0] sm:$0xff]
    %v1202 = vld [vmem:[#allocation8 + $0x1e8] sm:$0xff]
    %v1203 = vld [vmem:[#allocation8 + $0x1f0] sm:$0xff]
    %v1204 = vld [vmem:[#allocation8 + $0x1f8] sm:$0xff]
    %v1205 = vld [vmem:[#allocation8 + $0x200] sm:$0xff]
    %v1206 = vld [vmem:[#allocation8 + $0x208] sm:$0xff]
    %v1207 = vld [vmem:[#allocation8 + $0x210] sm:$0xff]
    %v1208 = vld [vmem:[#allocation8 + $0x218] sm:$0xff]
    %v1209 = vld [vmem:[#allocation8 + $0x220] sm:$0xff]
    %v1210 = vld [vmem:[#allocation8 + $0x228] sm:$0xff]
    %v1211 = vld [vmem:[#allocation8 + $0x230] sm:$0xff]
    %v1212 = vld [vmem:[#allocation8 + $0x238] sm:$0xff]
    %v1213 = vld [vmem:[#allocation8 + $0x240] sm:$0xff]
    %v1214 = vld [vmem:[#allocation8 + $0x248] sm:$0xff]
    %v1215 = vld [vmem:[#allocation8 + $0x250] sm:$0xff]
    %v1216 = vld [vmem:[#allocation8 + $0x258] sm:$0xff]
    %v1217 = vld [vmem:[#allocation8 + $0x260] sm:$0xff]
    %v1218 = vld [vmem:[#allocation8 + $0x268] sm:$0xff]
    %v1219 = vld [vmem:[#allocation8 + $0x270] sm:$0xff]
    %v1220 = vld [vmem:[#allocation8 + $0x278] sm:$0xff]
    %v1221 = vld [vmem:[#allocation8 + $0x280] sm:$0xff]
    %v1222 = vld [vmem:[#allocation8 + $0x288] sm:$0xff]
    %v1223 = vld [vmem:[#allocation8 + $0x290] sm:$0xff]
    %v1224 = vld [vmem:[#allocation8 + $0x298] sm:$0xff]
    %v1225 = vld [vmem:[#allocation8 + $0x2a0] sm:$0xff]
    %v1226 = vld [vmem:[#allocation8 + $0x2a8] sm:$0xff]
    %v1227 = vld [vmem:[#allocation8 + $0x2b0] sm:$0xff]
    %v1228 = vld [vmem:[#allocation8 + $0x2b8] sm:$0xff]
    %v1229 = vld [vmem:[#allocation8 + $0x2c0] sm:$0xff]
    %v1230 = vld [vmem:[#allocation8 + $0x2c8] sm:$0xff]
    %v1231 = vld [vmem:[#allocation8 + $0x2d0] sm:$0xff]
    %v1232 = vld [vmem:[#allocation8 + $0x2d8] sm:$0xff]
    %v1233 = vld [vmem:[#allocation8 + $0x2e0] sm:$0xff]
    %v1234 = vld [vmem:[#allocation8 + $0x2e8] sm:$0xff]
    %v1235 = vld [vmem:[#allocation8 + $0x2f0] sm:$0xff]
    %v1236 = vld [vmem:[#allocation8 + $0x2f8] sm:$0xff]
    %v1237 = vld [vmem:[#allocation8 + $0x300] sm:$0xff]
    %v1238 = vld [vmem:[#allocation8 + $0x308] sm:$0xff]
    %v1239 = vld [vmem:[#allocation8 + $0x310] sm:$0xff]
    %v1240 = vld [vmem:[#allocation8 + $0x318] sm:$0xff]
    %v1241 = vld [vmem:[#allocation8 + $0x320] sm:$0xff]
    %v1242 = vld [vmem:[#allocation8 + $0x328] sm:$0xff]
    %v1243 = vld [vmem:[#allocation8 + $0x330] sm:$0xff]
    %v1244 = vld [vmem:[#allocation8 + $0x338] sm:$0xff]
    %v1245 = vld [vmem:[#allocation8 + $0x340] sm:$0xff]
    %v1246 = vld [vmem:[#allocation8 + $0x348] sm:$0xff]
    %v1247 = vld [vmem:[#allocation8 + $0x350] sm:$0xff]
    %v1248 = vld [vmem:[#allocation8 + $0x358] sm:$0xff]
    %v1249 = vld [vmem:[#allocation8 + $0x360] sm:$0xff]
    %v1250 = vld [vmem:[#allocation8 + $0x368] sm:$0xff]
    %v1251 = vld [vmem:[#allocation8 + $0x370] sm:$0xff]
    %v1252 = vld [vmem:[#allocation8 + $0x378] sm:$0xff]
    %v1253 = vld [vmem:[#allocation8 + $0x380] sm:$0xff]
    %v1254 = vld [vmem:[#allocation8 + $0x388] sm:$0xff]
    %v1255 = vld [vmem:[#allocation8 + $0x390] sm:$0xff]
    %v1256 = vld [vmem:[#allocation8 + $0x398] sm:$0xff]
    %v1257 = vld [vmem:[#allocation8 + $0x3a0] sm:$0xff]
    %v1258 = vld [vmem:[#allocation8 + $0x3a8] sm:$0xff]
    %v1259 = vld [vmem:[#allocation8 + $0x3b0] sm:$0xff]
    %v1260 = vld [vmem:[#allocation8 + $0x3b8] sm:$0xff]
    %v1261 = vld [vmem:[#allocation8 + $0x3c0] sm:$0xff]
    %v1262 = vld [vmem:[#allocation8 + $0x3c8] sm:$0xff]
    %v1263 = vld [vmem:[#allocation8 + $0x3d0] sm:$0xff]
    %v1264 = vld [vmem:[#allocation8 + $0x3d8] sm:$0xff]
    %v1265 = vld [vmem:[#allocation8 + $0x3e0] sm:$0xff]
    %v1266 = vld [vmem:[#allocation8 + $0x3e8] sm:$0xff]
    %v1267 = vld [vmem:[#allocation8 + $0x3f0] sm:$0xff]
    %v1268 = vld [vmem:[#allocation8 + $0x3f8] sm:$0xff]
    %v1397 = vunpack.c.l.b16 %v1141
    %v1398 = vunpack.c.h.b16 %v1141
    %v1399 = vunpack.c.l.b16 %v1142
    %v1400 = vunpack.c.h.b16 %v1142
    %v1401 = vunpack.c.l.b16 %v1143
    %v1402 = vunpack.c.h.b16 %v1143
    %v1403 = vunpack.c.l.b16 %v1144
    %v1404 = vunpack.c.h.b16 %v1144
    %v1405 = vunpack.c.l.b16 %v1145
    %v1406 = vunpack.c.h.b16 %v1145
    %v1407 = vunpack.c.l.b16 %v1146
    %v1408 = vunpack.c.h.b16 %v1146
    %v1409 = vunpack.c.l.b16 %v1147
    %v1410 = vunpack.c.h.b16 %v1147
    %v1411 = vunpack.c.l.b16 %v1148
    %v1412 = vunpack.c.h.b16 %v1148
    %v1413 = vunpack.c.l.b16 %v1149
    %v1414 = vunpack.c.h.b16 %v1149
    %v1415 = vunpack.c.l.b16 %v1150
    %v1416 = vunpack.c.h.b16 %v1150
    %v1417 = vunpack.c.l.b16 %v1151
    %v1418 = vunpack.c.h.b16 %v1151
    %v1419 = vunpack.c.l.b16 %v1152
    %v1420 = vunpack.c.h.b16 %v1152
    %v1421 = vunpack.c.l.b16 %v1153
    %v1422 = vunpack.c.h.b16 %v1153
    %v1423 = vunpack.c.l.b16 %v1154
    %v1424 = vunpack.c.h.b16 %v1154
    %v1425 = vunpack.c.l.b16 %v1155
    %v1426 = vunpack.c.h.b16 %v1155
    %v1427 = vunpack.c.l.b16 %v1156
    %v1428 = vunpack.c.h.b16 %v1156
    %v1429 = vunpack.c.l.b16 %v1157
    %v1430 = vunpack.c.h.b16 %v1157
    %v1431 = vunpack.c.l.b16 %v1158
    %v1432 = vunpack.c.h.b16 %v1158
    %v1433 = vunpack.c.l.b16 %v1159
    %v1434 = vunpack.c.h.b16 %v1159
    %v1435 = vunpack.c.l.b16 %v1160
    %v1436 = vunpack.c.h.b16 %v1160
    %v1437 = vunpack.c.l.b16 %v1161
    %v1438 = vunpack.c.h.b16 %v1161
    %v1439 = vunpack.c.l.b16 %v1162
    %v1440 = vunpack.c.h.b16 %v1162
    %v1441 = vunpack.c.l.b16 %v1163
    %v1442 = vunpack.c.h.b16 %v1163
    %v1443 = vunpack.c.l.b16 %v1164
    %v1444 = vunpack.c.h.b16 %v1164
    %v1445 = vunpack.c.l.b16 %v1165
    %v1446 = vunpack.c.h.b16 %v1165
    %v1447 = vunpack.c.l.b16 %v1166
    %v1448 = vunpack.c.h.b16 %v1166
    %v1449 = vunpack.c.l.b16 %v1167
    %v1450 = vunpack.c.h.b16 %v1167
    %v1451 = vunpack.c.l.b16 %v1168
    %v1452 = vunpack.c.h.b16 %v1168
    %v1453 = vunpack.c.l.b16 %v1169
    %v1454 = vunpack.c.h.b16 %v1169
    %v1455 = vunpack.c.l.b16 %v1170
    %v1456 = vunpack.c.h.b16 %v1170
    %v1457 = vunpack.c.l.b16 %v1171
    %v1458 = vunpack.c.h.b16 %v1171
    %v1459 = vunpack.c.l.b16 %v1172
    %v1460 = vunpack.c.h.b16 %v1172
    %v1461 = vunpack.c.l.b16 %v1173
    %v1462 = vunpack.c.h.b16 %v1173
    %v1463 = vunpack.c.l.b16 %v1174
    %v1464 = vunpack.c.h.b16 %v1174
    %v1465 = vunpack.c.l.b16 %v1175
    %v1466 = vunpack.c.h.b16 %v1175
    %v1467 = vunpack.c.l.b16 %v1176
    %v1468 = vunpack.c.h.b16 %v1176
    %v1469 = vunpack.c.l.b16 %v1177
    %v1470 = vunpack.c.h.b16 %v1177
    %v1471 = vunpack.c.l.b16 %v1178
    %v1472 = vunpack.c.h.b16 %v1178
    %v1473 = vunpack.c.l.b16 %v1179
    %v1474 = vunpack.c.h.b16 %v1179
    %v1475 = vunpack.c.l.b16 %v1180
    %v1476 = vunpack.c.h.b16 %v1180
    %v1477 = vunpack.c.l.b16 %v1181
    %v1478 = vunpack.c.h.b16 %v1181
    %v1479 = vunpack.c.l.b16 %v1182
    %v1480 = vunpack.c.h.b16 %v1182
    %v1481 = vunpack.c.l.b16 %v1183
    %v1482 = vunpack.c.h.b16 %v1183
    %v1483 = vunpack.c.l.b16 %v1184
    %v1484 = vunpack.c.h.b16 %v1184
    %v1485 = vunpack.c.l.b16 %v1185
    %v1486 = vunpack.c.h.b16 %v1185
    %v1487 = vunpack.c.l.b16 %v1186
    %v1488 = vunpack.c.h.b16 %v1186
    %v1489 = vunpack.c.l.b16 %v1187
    %v1490 = vunpack.c.h.b16 %v1187
    %v1491 = vunpack.c.l.b16 %v1188
    %v1492 = vunpack.c.h.b16 %v1188
    %v1493 = vunpack.c.l.b16 %v1189
    %v1494 = vunpack.c.h.b16 %v1189
    %v1495 = vunpack.c.l.b16 %v1190
    %v1496 = vunpack.c.h.b16 %v1190
    %v1497 = vunpack.c.l.b16 %v1191
    %v1498 = vunpack.c.h.b16 %v1191
    %v1499 = vunpack.c.l.b16 %v1192
    %v1500 = vunpack.c.h.b16 %v1192
    %v1501 = vunpack.c.l.b16 %v1193
    %v1502 = vunpack.c.h.b16 %v1193
    %v1503 = vunpack.c.l.b16 %v1194
    %v1504 = vunpack.c.h.b16 %v1194
    %v1505 = vunpack.c.l.b16 %v1195
    %v1506 = vunpack.c.h.b16 %v1195
    %v1507 = vunpack.c.l.b16 %v1196
    %v1508 = vunpack.c.h.b16 %v1196
    %v1509 = vunpack.c.l.b16 %v1197
    %v1510 = vunpack.c.h.b16 %v1197
    %v1511 = vunpack.c.l.b16 %v1198
    %v1512 = vunpack.c.h.b16 %v1198
    %v1513 = vunpack.c.l.b16 %v1199
    %v1514 = vunpack.c.h.b16 %v1199
    %v1515 = vunpack.c.l.b16 %v1200
    %v1516 = vunpack.c.h.b16 %v1200
    %v1517 = vunpack.c.l.b16 %v1201
    %v1518 = vunpack.c.h.b16 %v1201
    %v1519 = vunpack.c.l.b16 %v1202
    %v1520 = vunpack.c.h.b16 %v1202
    %v1521 = vunpack.c.l.b16 %v1203
    %v1522 = vunpack.c.h.b16 %v1203
    %v1523 = vunpack.c.l.b16 %v1204
    %v1524 = vunpack.c.h.b16 %v1204
    %v1525 = vunpack.c.l.b16 %v1205
    %v1526 = vunpack.c.h.b16 %v1205
    %v1527 = vunpack.c.l.b16 %v1206
    %v1528 = vunpack.c.h.b16 %v1206
    %v1529 = vunpack.c.l.b16 %v1207
    %v1530 = vunpack.c.h.b16 %v1207
    %v1531 = vunpack.c.l.b16 %v1208
    %v1532 = vunpack.c.h.b16 %v1208
    %v1533 = vunpack.c.l.b16 %v1209
    %v1534 = vunpack.c.h.b16 %v1209
    %v1535 = vunpack.c.l.b16 %v1210
    %v1536 = vunpack.c.h.b16 %v1210
    %v1537 = vunpack.c.l.b16 %v1211
    %v1538 = vunpack.c.h.b16 %v1211
    %v1539 = vunpack.c.l.b16 %v1212
    %v1540 = vunpack.c.h.b16 %v1212
    %v1541 = vunpack.c.l.b16 %v1213
    %v1542 = vunpack.c.h.b16 %v1213
    %v1543 = vunpack.c.l.b16 %v1214
    %v1544 = vunpack.c.h.b16 %v1214
    %v1545 = vunpack.c.l.b16 %v1215
    %v1546 = vunpack.c.h.b16 %v1215
    %v1547 = vunpack.c.l.b16 %v1216
    %v1548 = vunpack.c.h.b16 %v1216
    %v1549 = vunpack.c.l.b16 %v1217
    %v1550 = vunpack.c.h.b16 %v1217
    %v1551 = vunpack.c.l.b16 %v1218
    %v1552 = vunpack.c.h.b16 %v1218
    %v1553 = vunpack.c.l.b16 %v1219
    %v1554 = vunpack.c.h.b16 %v1219
    %v1555 = vunpack.c.l.b16 %v1220
    %v1556 = vunpack.c.h.b16 %v1220
    %v1557 = vunpack.c.l.b16 %v1221
    %v1558 = vunpack.c.h.b16 %v1221
    %v1559 = vunpack.c.l.b16 %v1222
    %v1560 = vunpack.c.h.b16 %v1222
    %v1561 = vunpack.c.l.b16 %v1223
    %v1562 = vunpack.c.h.b16 %v1223
    %v1563 = vunpack.c.l.b16 %v1224
    %v1564 = vunpack.c.h.b16 %v1224
    %v1565 = vunpack.c.l.b16 %v1225
    %v1566 = vunpack.c.h.b16 %v1225
    %v1567 = vunpack.c.l.b16 %v1226
    %v1568 = vunpack.c.h.b16 %v1226
    %v1569 = vunpack.c.l.b16 %v1227
    %v1570 = vunpack.c.h.b16 %v1227
    %v1571 = vunpack.c.l.b16 %v1228
    %v1572 = vunpack.c.h.b16 %v1228
    %v1573 = vunpack.c.l.b16 %v1229
    %v1574 = vunpack.c.h.b16 %v1229
    %v1575 = vunpack.c.l.b16 %v1230
    %v1576 = vunpack.c.h.b16 %v1230
    %v1577 = vunpack.c.l.b16 %v1231
    %v1578 = vunpack.c.h.b16 %v1231
    %v1579 = vunpack.c.l.b16 %v1232
    %v1580 = vunpack.c.h.b16 %v1232
    %v1581 = vunpack.c.l.b16 %v1233
    %v1582 = vunpack.c.h.b16 %v1233
    %v1583 = vunpack.c.l.b16 %v1234
    %v1584 = vunpack.c.h.b16 %v1234
    %v1585 = vunpack.c.l.b16 %v1235
    %v1586 = vunpack.c.h.b16 %v1235
    %v1587 = vunpack.c.l.b16 %v1236
    %v1588 = vunpack.c.h.b16 %v1236
    %v1589 = vunpack.c.l.b16 %v1237
    %v1590 = vunpack.c.h.b16 %v1237
    %v1591 = vunpack.c.l.b16 %v1238
    %v1592 = vunpack.c.h.b16 %v1238
    %v1593 = vunpack.c.l.b16 %v1239
    %v1594 = vunpack.c.h.b16 %v1239
    %v1595 = vunpack.c.l.b16 %v1240
    %v1596 = vunpack.c.h.b16 %v1240
    %v1597 = vunpack.c.l.b16 %v1241
    %v1598 = vunpack.c.h.b16 %v1241
    %v1599 = vunpack.c.l.b16 %v1242
    %v1600 = vunpack.c.h.b16 %v1242
    %v1601 = vunpack.c.l.b16 %v1243
    %v1602 = vunpack.c.h.b16 %v1243
    %v1603 = vunpack.c.l.b16 %v1244
    %v1604 = vunpack.c.h.b16 %v1244
    %v1605 = vunpack.c.l.b16 %v1245
    %v1606 = vunpack.c.h.b16 %v1245
    %v1607 = vunpack.c.l.b16 %v1246
    %v1608 = vunpack.c.h.b16 %v1246
    %v1609 = vunpack.c.l.b16 %v1247
    %v1610 = vunpack.c.h.b16 %v1247
    %v1611 = vunpack.c.l.b16 %v1248
    %v1612 = vunpack.c.h.b16 %v1248
    %v1613 = vunpack.c.l.b16 %v1249
    %v1614 = vunpack.c.h.b16 %v1249
    %v1615 = vunpack.c.l.b16 %v1250
    %v1616 = vunpack.c.h.b16 %v1250
    %v1617 = vunpack.c.l.b16 %v1251
    %v1618 = vunpack.c.h.b16 %v1251
    %v1619 = vunpack.c.l.b16 %v1252
    %v1620 = vunpack.c.h.b16 %v1252
    %v1621 = vunpack.c.l.b16 %v1253
    %v1622 = vunpack.c.h.b16 %v1253
    %v1623 = vunpack.c.l.b16 %v1254
    %v1624 = vunpack.c.h.b16 %v1254
    %v1625 = vunpack.c.l.b16 %v1255
    %v1626 = vunpack.c.h.b16 %v1255
    %v1627 = vunpack.c.l.b16 %v1256
    %v1628 = vunpack.c.h.b16 %v1256
    %v1629 = vunpack.c.l.b16 %v1257
    %v1630 = vunpack.c.h.b16 %v1257
    %v1631 = vunpack.c.l.b16 %v1258
    %v1632 = vunpack.c.h.b16 %v1258
    %v1633 = vunpack.c.l.b16 %v1259
    %v1634 = vunpack.c.h.b16 %v1259
    %v1635 = vunpack.c.l.b16 %v1260
    %v1636 = vunpack.c.h.b16 %v1260
    %v1637 = vunpack.c.l.b16 %v1261
    %v1638 = vunpack.c.h.b16 %v1261
    %v1639 = vunpack.c.l.b16 %v1262
    %v1640 = vunpack.c.h.b16 %v1262
    %v1641 = vunpack.c.l.b16 %v1263
    %v1642 = vunpack.c.h.b16 %v1263
    %v1643 = vunpack.c.l.b16 %v1264
    %v1644 = vunpack.c.h.b16 %v1264
    %v1645 = vunpack.c.l.b16 %v1265
    %v1646 = vunpack.c.h.b16 %v1265
    %v1647 = vunpack.c.l.b16 %v1266
    %v1648 = vunpack.c.h.b16 %v1266
    %v1649 = vunpack.c.l.b16 %v1267
    %v1650 = vunpack.c.h.b16 %v1267
    %v1651 = vunpack.c.l.b16 %v1268
    %v1652 = vunpack.c.h.b16 %v1268
    %v1653 = vpack.c.b16 %v1399, %v1397
    %v1654 = vpack.c.b16 %v1400, %v1398
    %v1655 = vpack.c.b16 %v1403, %v1401
    %v1656 = vpack.c.b16 %v1404, %v1402
    %v1657 = vpack.c.b16 %v1407, %v1405
    %v1658 = vpack.c.b16 %v1408, %v1406
    %v1659 = vpack.c.b16 %v1411, %v1409
    %v1660 = vpack.c.b16 %v1412, %v1410
    %v1661 = vpack.c.b16 %v1415, %v1413
    %v1662 = vpack.c.b16 %v1416, %v1414
    %v1663 = vpack.c.b16 %v1419, %v1417
    %v1664 = vpack.c.b16 %v1420, %v1418
    %v1665 = vpack.c.b16 %v1423, %v1421
    %v1666 = vpack.c.b16 %v1424, %v1422
    %v1667 = vpack.c.b16 %v1427, %v1425
    %v1668 = vpack.c.b16 %v1428, %v1426
    %v1669 = vpack.c.b16 %v1431, %v1429
    %v1670 = vpack.c.b16 %v1432, %v1430
    %v1671 = vpack.c.b16 %v1435, %v1433
    %v1672 = vpack.c.b16 %v1436, %v1434
    %v1673 = vpack.c.b16 %v1439, %v1437
    %v1674 = vpack.c.b16 %v1440, %v1438
    %v1675 = vpack.c.b16 %v1443, %v1441
    %v1676 = vpack.c.b16 %v1444, %v1442
    %v1677 = vpack.c.b16 %v1447, %v1445
    %v1678 = vpack.c.b16 %v1448, %v1446
    %v1679 = vpack.c.b16 %v1451, %v1449
    %v1680 = vpack.c.b16 %v1452, %v1450
    %v1681 = vpack.c.b16 %v1455, %v1453
    %v1682 = vpack.c.b16 %v1456, %v1454
    %v1683 = vpack.c.b16 %v1459, %v1457
    %v1684 = vpack.c.b16 %v1460, %v1458
    %v1685 = vpack.c.b16 %v1463, %v1461
    %v1686 = vpack.c.b16 %v1464, %v1462
    %v1687 = vpack.c.b16 %v1467, %v1465
    %v1688 = vpack.c.b16 %v1468, %v1466
    %v1689 = vpack.c.b16 %v1471, %v1469
    %v1690 = vpack.c.b16 %v1472, %v1470
    %v1691 = vpack.c.b16 %v1475, %v1473
    %v1692 = vpack.c.b16 %v1476, %v1474
    %v1693 = vpack.c.b16 %v1479, %v1477
    %v1694 = vpack.c.b16 %v1480, %v1478
    %v1695 = vpack.c.b16 %v1483, %v1481
    %v1696 = vpack.c.b16 %v1484, %v1482
    %v1697 = vpack.c.b16 %v1487, %v1485
    %v1698 = vpack.c.b16 %v1488, %v1486
    %v1699 = vpack.c.b16 %v1491, %v1489
    %v1700 = vpack.c.b16 %v1492, %v1490
    %v1701 = vpack.c.b16 %v1495, %v1493
    %v1702 = vpack.c.b16 %v1496, %v1494
    %v1703 = vpack.c.b16 %v1499, %v1497
    %v1704 = vpack.c.b16 %v1500, %v1498
    %v1705 = vpack.c.b16 %v1503, %v1501
    %v1706 = vpack.c.b16 %v1504, %v1502
    %v1707 = vpack.c.b16 %v1507, %v1505
    %v1708 = vpack.c.b16 %v1508, %v1506
    %v1709 = vpack.c.b16 %v1511, %v1509
    %v1710 = vpack.c.b16 %v1512, %v1510
    %v1711 = vpack.c.b16 %v1515, %v1513
    %v1712 = vpack.c.b16 %v1516, %v1514
    %v1713 = vpack.c.b16 %v1519, %v1517
    %v1714 = vpack.c.b16 %v1520, %v1518
    %v1715 = vpack.c.b16 %v1523, %v1521
    %v1716 = vpack.c.b16 %v1524, %v1522
    %v1717 = vpack.c.b16 %v1527, %v1525
    %v1718 = vpack.c.b16 %v1528, %v1526
    %v1719 = vpack.c.b16 %v1531, %v1529
    %v1720 = vpack.c.b16 %v1532, %v1530
    %v1721 = vpack.c.b16 %v1535, %v1533
    %v1722 = vpack.c.b16 %v1536, %v1534
    %v1723 = vpack.c.b16 %v1539, %v1537
    %v1724 = vpack.c.b16 %v1540, %v1538
    %v1725 = vpack.c.b16 %v1543, %v1541
    %v1726 = vpack.c.b16 %v1544, %v1542
    %v1727 = vpack.c.b16 %v1547, %v1545
    %v1728 = vpack.c.b16 %v1548, %v1546
    %v1729 = vpack.c.b16 %v1551, %v1549
    %v1730 = vpack.c.b16 %v1552, %v1550
    %v1731 = vpack.c.b16 %v1555, %v1553
    %v1732 = vpack.c.b16 %v1556, %v1554
    %v1733 = vpack.c.b16 %v1559, %v1557
    %v1734 = vpack.c.b16 %v1560, %v1558
    %v1735 = vpack.c.b16 %v1563, %v1561
    %v1736 = vpack.c.b16 %v1564, %v1562
    %v1737 = vpack.c.b16 %v1567, %v1565
    %v1738 = vpack.c.b16 %v1568, %v1566
    %v1739 = vpack.c.b16 %v1571, %v1569
    %v1740 = vpack.c.b16 %v1572, %v1570
    %v1741 = vpack.c.b16 %v1575, %v1573
    %v1742 = vpack.c.b16 %v1576, %v1574
    %v1743 = vpack.c.b16 %v1579, %v1577
    %v1744 = vpack.c.b16 %v1580, %v1578
    %v1745 = vpack.c.b16 %v1583, %v1581
    %v1746 = vpack.c.b16 %v1584, %v1582
    %v1747 = vpack.c.b16 %v1587, %v1585
    %v1748 = vpack.c.b16 %v1588, %v1586
    %v1749 = vpack.c.b16 %v1591, %v1589
    %v1750 = vpack.c.b16 %v1592, %v1590
    %v1751 = vpack.c.b16 %v1595, %v1593
    %v1752 = vpack.c.b16 %v1596, %v1594
    %v1753 = vpack.c.b16 %v1599, %v1597
    %v1754 = vpack.c.b16 %v1600, %v1598
    %v1755 = vpack.c.b16 %v1603, %v1601
    %v1756 = vpack.c.b16 %v1604, %v1602
    %v1757 = vpack.c.b16 %v1607, %v1605
    %v1758 = vpack.c.b16 %v1608, %v1606
    %v1759 = vpack.c.b16 %v1611, %v1609
    %v1760 = vpack.c.b16 %v1612, %v1610
    %v1761 = vpack.c.b16 %v1615, %v1613
    %v1762 = vpack.c.b16 %v1616, %v1614
    %v1763 = vpack.c.b16 %v1619, %v1617
    %v1764 = vpack.c.b16 %v1620, %v1618
    %v1765 = vpack.c.b16 %v1623, %v1621
    %v1766 = vpack.c.b16 %v1624, %v1622
    %v1767 = vpack.c.b16 %v1627, %v1625
    %v1768 = vpack.c.b16 %v1628, %v1626
    %v1769 = vpack.c.b16 %v1631, %v1629
    %v1770 = vpack.c.b16 %v1632, %v1630
    %v1771 = vpack.c.b16 %v1635, %v1633
    %v1772 = vpack.c.b16 %v1636, %v1634
    %v1773 = vpack.c.b16 %v1639, %v1637
    %v1774 = vpack.c.b16 %v1640, %v1638
    %v1775 = vpack.c.b16 %v1643, %v1641
    %v1776 = vpack.c.b16 %v1644, %v1642
    %v1777 = vpack.c.b16 %v1647, %v1645
    %v1778 = vpack.c.b16 %v1648, %v1646
    %v1779 = vpack.c.b16 %v1651, %v1649
    %v1780 = vpack.c.b16 %v1652, %v1650
    %1909 = vmatpush.bf16.msra.mxu0 %v1667
    %1910 = vmatpush.bf16.msra.mxu0 %v1665
    %1911 = vmatpush.bf16.msra.mxu0 %v1663
    %1912 = vmatpush.bf16.msra.mxu0 %v1661
    %1913 = vmatpush.bf16.msra.mxu0 %v1659
    %1914 = vmatpush.bf16.msra.mxu0 %v1657
    %1915 = vmatpush.bf16.msra.mxu0 %v1655
    %1916 = vmatpush.bf16.msra.mxu0 %v1653
    %1917 = vmatmul.bf16.gmra.mxu0 %v1133
    %v1918 = vpop.f32.mrf.mxu0
    %v1919 = vadd.f32 0.0, %v1918
    %v1920 = vpop.f32.mrf.mxu0
    %v1921 = vadd.f32 0.0, %v1920
    %1922 = vdwg.mxu0
    %1923 = vmatpush.bf16.msra.mxu0 %v1683
    %1924 = vmatpush.bf16.msra.mxu0 %v1681
    %1925 = vmatpush.bf16.msra.mxu0 %v1679
    %1926 = vmatpush.bf16.msra.mxu0 %v1677
    %1927 = vmatpush.bf16.msra.mxu0 %v1675
    %1928 = vmatpush.bf16.msra.mxu0 %v1673
    %1929 = vmatpush.bf16.msra.mxu0 %v1671
    %1930 = vmatpush.bf16.msra.mxu0 %v1669
    %1931 = vmatmul.bf16.gmra.mxu0 %v1134
    %v1932 = vpop.f32.mrf.mxu0
    %v1933 = vadd.f32 %v1919, %v1932
    %v1934 = vpop.f32.mrf.mxu0
    %v1935 = vadd.f32 %v1921, %v1934
    %1936 = vdwg.mxu0
    %1937 = vmatpush.bf16.msra.mxu0 %v1699
    %1938 = vmatpush.bf16.msra.mxu0 %v1697
    %1939 = vmatpush.bf16.msra.mxu0 %v1695
    %1940 = vmatpush.bf16.msra.mxu0 %v1693
    %1941 = vmatpush.bf16.msra.mxu0 %v1691
    %1942 = vmatpush.bf16.msra.mxu0 %v1689
    %1943 = vmatpush.bf16.msra.mxu0 %v1687
    %1944 = vmatpush.bf16.msra.mxu0 %v1685
    %1945 = vmatmul.bf16.gmra.mxu0 %v1135
    %v1946 = vpop.f32.mrf.mxu0
    %v1947 = vadd.f32 %v1933, %v1946
    %v1948 = vpop.f32.mrf.mxu0
    %v1949 = vadd.f32 %v1935, %v1948
    %1950 = vdwg.mxu0
    %1951 = vmatpush.bf16.msra.mxu0 %v1715
    %1952 = vmatpush.bf16.msra.mxu0 %v1713
    %1953 = vmatpush.bf16.msra.mxu0 %v1711
    %1954 = vmatpush.bf16.msra.mxu0 %v1709
    %1955 = vmatpush.bf16.msra.mxu0 %v1707
    %1956 = vmatpush.bf16.msra.mxu0 %v1705
    %1957 = vmatpush.bf16.msra.mxu0 %v1703
    %1958 = vmatpush.bf16.msra.mxu0 %v1701
    %1959 = vmatmul.bf16.gmra.mxu0 %v1136
    %v1960 = vpop.f32.mrf.mxu0
    %v1961 = vadd.f32 %v1947, %v1960
    %v1962 = vpop.f32.mrf.mxu0
    %v1963 = vadd.f32 %v1949, %v1962
    %1964 = vdwg.mxu0
    %1965 = vmatpush.bf16.msra.mxu0 %v1731
    %1966 = vmatpush.bf16.msra.mxu0 %v1729
    %1967 = vmatpush.bf16.msra.mxu0 %v1727
    %1968 = vmatpush.bf16.msra.mxu0 %v1725
    %1969 = vmatpush.bf16.msra.mxu0 %v1723
    %1970 = vmatpush.bf16.msra.mxu0 %v1721
    %1971 = vmatpush.bf16.msra.mxu0 %v1719
    %1972 = vmatpush.bf16.msra.mxu0 %v1717
    %1973 = vmatmul.bf16.gmra.mxu0 %v1137
    %v1974 = vpop.f32.mrf.mxu0
    %v1975 = vadd.f32 %v1961, %v1974
    %v1976 = vpop.f32.mrf.mxu0
    %v1977 = vadd.f32 %v1963, %v1976
    %1978 = vdwg.mxu0
    %1979 = vmatpush.bf16.msra.mxu0 %v1747
    %1980 = vmatpush.bf16.msra.mxu0 %v1745
    %1981 = vmatpush.bf16.msra.mxu0 %v1743
    %1982 = vmatpush.bf16.msra.mxu0 %v1741
    %1983 = vmatpush.bf16.msra.mxu0 %v1739
    %1984 = vmatpush.bf16.msra.mxu0 %v1737
    %1985 = vmatpush.bf16.msra.mxu0 %v1735
    %1986 = vmatpush.bf16.msra.mxu0 %v1733
    %1987 = vmatmul.bf16.gmra.mxu0 %v1138
    %v1988 = vpop.f32.mrf.mxu0
    %v1989 = vadd.f32 %v1975, %v1988
    %v1990 = vpop.f32.mrf.mxu0
    %v1991 = vadd.f32 %v1977, %v1990
    %1992 = vdwg.mxu0
    %1993 = vmatpush.bf16.msra.mxu0 %v1763
    %1994 = vmatpush.bf16.msra.mxu0 %v1761
    %1995 = vmatpush.bf16.msra.mxu0 %v1759
    %1996 = vmatpush.bf16.msra.mxu0 %v1757
    %1997 = vmatpush.bf16.msra.mxu0 %v1755
    %1998 = vmatpush.bf16.msra.mxu0 %v1753
    %1999 = vmatpush.bf16.msra.mxu0 %v1751
    %2000 = vmatpush.bf16.msra.mxu0 %v1749
    %2001 = vmatmul.bf16.gmra.mxu0 %v1139
    %v2002 = vpop.f32.mrf.mxu0
    %v2003 = vadd.f32 %v1989, %v2002
    %v2004 = vpop.f32.mrf.mxu0
    %v2005 = vadd.f32 %v1991, %v2004
    %2006 = vdwg.mxu0
    %2007 = vmatpush.bf16.msra.mxu0 %v1779
    %2008 = vmatpush.bf16.msra.mxu0 %v1777
    %2009 = vmatpush.bf16.msra.mxu0 %v1775
    %2010 = vmatpush.bf16.msra.mxu0 %v1773
    %2011 = vmatpush.bf16.msra.mxu0 %v1771
    %2012 = vmatpush.bf16.msra.mxu0 %v1769
    %2013 = vmatpush.bf16.msra.mxu0 %v1767
    %2014 = vmatpush.bf16.msra.mxu0 %v1765
    %2015 = vmatmul.bf16.gmra.mxu0 %v1140
    %v2016 = vpop.f32.mrf.mxu0
    %v2017 = vadd.f32 %v2003, %v2016
    %v2018 = vpop.f32.mrf.mxu0
    %v2019 = vadd.f32 %v2005, %v2018
    %2020 = vdwg.mxu0
    %2021 = vmatpush.bf16.msra.mxu0 %v1668
    %2022 = vmatpush.bf16.msra.mxu0 %v1666
    %2023 = vmatpush.bf16.msra.mxu0 %v1664
    %2024 = vmatpush.bf16.msra.mxu0 %v1662
    %2025 = vmatpush.bf16.msra.mxu0 %v1660
    %2026 = vmatpush.bf16.msra.mxu0 %v1658
    %2027 = vmatpush.bf16.msra.mxu0 %v1656
    %2028 = vmatpush.bf16.msra.mxu0 %v1654
    %2029 = vmatmul.bf16.gmra.mxu0 %v1133
    %v2030 = vpop.f32.mrf.mxu0
    %v2031 = vadd.f32 0.0, %v2030
    %v2032 = vpop.f32.mrf.mxu0
    %v2033 = vadd.f32 0.0, %v2032
    %2034 = vdwg.mxu0
    %2035 = vmatpush.bf16.msra.mxu0 %v1684
    %2036 = vmatpush.bf16.msra.mxu0 %v1682
    %2037 = vmatpush.bf16.msra.mxu0 %v1680
    %2038 = vmatpush.bf16.msra.mxu0 %v1678
    %2039 = vmatpush.bf16.msra.mxu0 %v1676
    %2040 = vmatpush.bf16.msra.mxu0 %v1674
    %2041 = vmatpush.bf16.msra.mxu0 %v1672
    %2042 = vmatpush.bf16.msra.mxu0 %v1670
    %2043 = vmatmul.bf16.gmra.mxu0 %v1134
    %v2044 = vpop.f32.mrf.mxu0
    %v2045 = vadd.f32 %v2031, %v2044
    %v2046 = vpop.f32.mrf.mxu0
    %v2047 = vadd.f32 %v2033, %v2046
    %2048 = vdwg.mxu0
    %2049 = vmatpush.bf16.msra.mxu0 %v1700
    %2050 = vmatpush.bf16.msra.mxu0 %v1698
    %2051 = vmatpush.bf16.msra.mxu0 %v1696
    %2052 = vmatpush.bf16.msra.mxu0 %v1694
    %2053 = vmatpush.bf16.msra.mxu0 %v1692
    %2054 = vmatpush.bf16.msra.mxu0 %v1690
    %2055 = vmatpush.bf16.msra.mxu0 %v1688
    %2056 = vmatpush.bf16.msra.mxu0 %v1686
    %2057 = vmatmul.bf16.gmra.mxu0 %v1135
    %v2058 = vpop.f32.mrf.mxu0
    %v2059 = vadd.f32 %v2045, %v2058
    %v2060 = vpop.f32.mrf.mxu0
    %v2061 = vadd.f32 %v2047, %v2060
    %2062 = vdwg.mxu0
    %2063 = vmatpush.bf16.msra.mxu0 %v1716
    %2064 = vmatpush.bf16.msra.mxu0 %v1714
    %2065 = vmatpush.bf16.msra.mxu0 %v1712
    %2066 = vmatpush.bf16.msra.mxu0 %v1710
    %2067 = vmatpush.bf16.msra.mxu0 %v1708
    %2068 = vmatpush.bf16.msra.mxu0 %v1706
    %2069 = vmatpush.bf16.msra.mxu0 %v1704
    %2070 = vmatpush.bf16.msra.mxu0 %v1702
    %2071 = vmatmul.bf16.gmra.mxu0 %v1136
    %v2072 = vpop.f32.mrf.mxu0
    %v2073 = vadd.f32 %v2059, %v2072
    %v2074 = vpop.f32.mrf.mxu0
    %v2075 = vadd.f32 %v2061, %v2074
    %2076 = vdwg.mxu0
    %2077 = vmatpush.bf16.msra.mxu0 %v1732
    %2078 = vmatpush.bf16.msra.mxu0 %v1730
    %2079 = vmatpush.bf16.msra.mxu0 %v1728
    %2080 = vmatpush.bf16.msra.mxu0 %v1726
    %2081 = vmatpush.bf16.msra.mxu0 %v1724
    %2082 = vmatpush.bf16.msra.mxu0 %v1722
    %2083 = vmatpush.bf16.msra.mxu0 %v1720
    %2084 = vmatpush.bf16.msra.mxu0 %v1718
    %2085 = vmatmul.bf16.gmra.mxu0 %v1137
    %v2086 = vpop.f32.mrf.mxu0
    %v2087 = vadd.f32 %v2073, %v2086
    %v2088 = vpop.f32.mrf.mxu0
    %v2089 = vadd.f32 %v2075, %v2088
    %2090 = vdwg.mxu0
    %2091 = vmatpush.bf16.msra.mxu0 %v1748
    %2092 = vmatpush.bf16.msra.mxu0 %v1746
    %2093 = vmatpush.bf16.msra.mxu0 %v1744
    %2094 = vmatpush.bf16.msra.mxu0 %v1742
    %2095 = vmatpush.bf16.msra.mxu0 %v1740
    %2096 = vmatpush.bf16.msra.mxu0 %v1738
    %2097 = vmatpush.bf16.msra.mxu0 %v1736
    %2098 = vmatpush.bf16.msra.mxu0 %v1734
    %2099 = vmatmul.bf16.gmra.mxu0 %v1138
    %v2100 = vpop.f32.mrf.mxu0
    %v2101 = vadd.f32 %v2087, %v2100
    %v2102 = vpop.f32.mrf.mxu0
    %v2103 = vadd.f32 %v2089, %v2102
    %2104 = vdwg.mxu0
    %2105 = vmatpush.bf16.msra.mxu0 %v1764
    %2106 = vmatpush.bf16.msra.mxu0 %v1762
    %2107 = vmatpush.bf16.msra.mxu0 %v1760
    %2108 = vmatpush.bf16.msra.mxu0 %v1758
    %2109 = vmatpush.bf16.msra.mxu0 %v1756
    %2110 = vmatpush.bf16.msra.mxu0 %v1754
    %2111 = vmatpush.bf16.msra.mxu0 %v1752
    %2112 = vmatpush.bf16.msra.mxu0 %v1750
    %2113 = vmatmul.bf16.gmra.mxu0 %v1139
    %v2114 = vpop.f32.mrf.mxu0
    %v2115 = vadd.f32 %v2101, %v2114
    %v2116 = vpop.f32.mrf.mxu0
    %v2117 = vadd.f32 %v2103, %v2116
    %2118 = vdwg.mxu0
    %2119 = vmatpush.bf16.msra.mxu0 %v1780
    %2120 = vmatpush.bf16.msra.mxu0 %v1778
    %2121 = vmatpush.bf16.msra.mxu0 %v1776
    %2122 = vmatpush.bf16.msra.mxu0 %v1774
    %2123 = vmatpush.bf16.msra.mxu0 %v1772
    %2124 = vmatpush.bf16.msra.mxu0 %v1770
    %2125 = vmatpush.bf16.msra.mxu0 %v1768
    %2126 = vmatpush.bf16.msra.mxu0 %v1766
    %2127 = vmatmul.bf16.gmra.mxu0 %v1140
    %v2128 = vpop.f32.mrf.mxu0
    %v2129 = vadd.f32 %v2115, %v2128
    %v2130 = vpop.f32.mrf.mxu0
    %v2131 = vadd.f32 %v2117, %v2130
    %2132 = vdwg.mxu0
    %v2133 = vadd.f32 %v101, %v2017
    %v2134 = vadd.f32 %v102, %v2129
    %v2135 = vadd.f32 %v103, %v2019
    %v2136 = vadd.f32 %v104, %v2131
    %v2137 = vld [vmem:[%s4] sm:$0x3]
    %v2139 = vperm.slane %v2137, 0
    %v2140 = vperm.slane %v2137, 1
    %v2143 = vadd.f32 %v2133, %v2139
    %v2144 = vadd.f32 %v2134, %v2140
    %v2145 = vadd.f32 %v2135, %v2139
    %v2146 = vadd.f32 %v2136, %v2140
    %v2147 = vadd.f32 %v2143, %v2144
    %2148 = vadd.xlane.f32.xlu0 %v2147
    %v2149 = vpop.xlane.xlu0 %2148
    %v2150 = vadd.f32 %v2145, %v2146
    %2151 = vadd.xlane.f32.xlu0 %v2150
    %v2152 = vpop.xlane.xlu0 %2151
    %v2153 = vrcp.pop 256.0
    %v2154 = vmul.f32 256.0, %v2153
    %v2155 = vsub.f32 1.0, %v2154
    %v2156 = vmul.f32 %v2153, %v2155
    %v2157 = vadd.f32 %v2153, %v2156
    %vm2158 = vweird.f32 %v2153
    %v2159 = vsel %vm2158, %v2153, %v2157
    %v2160 = vmul.f32 %v2149, %v2159
    %v2161 = vmul.f32 %v2152, %v2159
    %v2162 = vsub.f32 %v2143, %v2160
    %v2163 = vsub.f32 %v2144, %v2160
    %v2164 = vsub.f32 %v2145, %v2161
    %v2165 = vsub.f32 %v2146, %v2161
    %v2166 = vmul.f32 %v2162, %v2162
    %v2167 = vmul.f32 %v2163, %v2163
    %v2168 = vmul.f32 %v2164, %v2164
    %v2169 = vmul.f32 %v2165, %v2165
    %v2170 = vadd.f32 %v2166, %v2167
    %2171 = vadd.xlane.f32.xlu0 %v2170
    %v2172 = vpop.xlane.xlu0 %2171
    %v2173 = vadd.f32 %v2168, %v2169
    %2174 = vadd.xlane.f32.xlu0 %v2173
    %v2175 = vpop.xlane.xlu0 %2174
    %v2176 = vmul.f32 %v2172, %v2159
    %v2177 = vmul.f32 %v2175, %v2159
    %v2178 = vadd.f32 %v2176, 1e-05
    %v2179 = vadd.f32 %v2177, 1e-05
    %v2180 = vrsqrt.pop %v2178
    %v2181 = vmul.f32 %v2180, %v2178
    %v2182 = vmul.f32 %v2181, %v2180
    %v2183 = vmul.f32 0.5, %v2182
    %v2184 = vsub.f32 1.5, %v2183
    %v2185 = vmul.f32 %v2180, %v2184
    %vm2186 = vweird.f32 %v2178
    %vm2187 = vweird.f32 %v2180
    %vm2188 = vmor %vm2186, %vm2187
    %v2189 = vsel %vm2188, %v2180, %v2185
    %v2190 = vrsqrt.pop %v2179
    %v2191 = vmul.f32 %v2190, %v2179
    %v2192 = vmul.f32 %v2191, %v2190
    %v2193 = vmul.f32 0.5, %v2192
    %v2194 = vsub.f32 1.5, %v2193
    %v2195 = vmul.f32 %v2190, %v2194
    %vm2196 = vweird.f32 %v2179
    %vm2197 = vweird.f32 %v2190
    %vm2198 = vmor %vm2196, %vm2197
    %v2199 = vsel %vm2198, %v2190, %v2195
    %v2200 = vmul.f32 %v2162, %v2189
    %v2201 = vmul.f32 %v2163, %v2189
    %v2202 = vmul.f32 %v2164, %v2199
    %v2203 = vmul.f32 %v2165, %v2199
    %v2204 = vld [vmem:[%s5] sm:$0x3]
    %v2206 = vperm.slane %v2204, 0
    %v2207 = vperm.slane %v2204, 1
    %v2210 = vmul.f32 %v2200, %v2206
    %v2211 = vmul.f32 %v2201, %v2207
    %v2212 = vmul.f32 %v2202, %v2206
    %v2213 = vmul.f32 %v2203, %v2207
    %v2214 = vld [vmem:[#allocation10] sm:$0x3]
    %v2216 = vperm.slane %v2214, 0
    %v2217 = vperm.slane %v2214, 1
    %v2220 = vadd.f32 %v2210, %v2216
    %v2221 = vadd.f32 %v2211, %v2217
    %v2222 = vadd.f32 %v2212, %v2216
    %v2223 = vadd.f32 %v2213, %v2217
    %2224 = vst [vmem:[#allocation11] sm:$0xff] %v2220
    %2225 = vst [vmem:[#allocation11 + $0x8] sm:$0xff] %v2221
    %2226 = vst [vmem:[#allocation11 + $0x10] sm:$0xff] %v2222
    %2227 = vst [vmem:[#allocation11 + $0x18] sm:$0xff] %v2223
    // Predicated region
    $region50: #{_ffn_impl.1} parent=1 // pred_check
      _
    $region51: #{_ffn_impl.1} parent=1 // pred_check_branch
      %2229 = sbr.rel (0) target = $region53
    $region52: #{_ffn_impl.1} parent=1 // pred_region
      %2231 = vsyncadd [#allocation4], 0
      %s2232 = sshll.u32 [#allocation11], 4
      %s2233 = int_to_ptr.vmem [resolvable:$true] %s2232
      %s2234 = sshll.u32 %s7, 4
      %s2235 = int_to_ptr.hbm [resolvable:$true] %s2234
      %2240 = dma.vmem_to_hbm [thread:$0]  %s2233, 512, %s2235, [#allocation4], 256, 256, 16
    $region53: #{_ffn_impl.1} parent=1 // pred_fallthru
      _
    // Predicated region
    $region54: #{_ffn_impl.1} parent=1 // pred_check
      _
    $region55: #{_ffn_impl.1} parent=1 // pred_check_branch
      %2242 = sbr.rel (0) target = $region57
    $region56: #{_ffn_impl.1} parent=1 // pred_region
      %2244 = dma.done [#allocation4], 512
    $region57: #{_ffn_impl.1} parent=1 // pred_fallthru
      _
    %2245 = vsyncpa [#allocation3], 1
    %2246 = vsyncpa [#allocation6], 1
    %2247 = vsyncpa [#allocation9], 1
    %2248 = vsyncpa [#allocation4], 1

</llo_original>
